<compile_context>
chip_gen: v6e
topology: v6e:2x2x1
jax: 0.10.0
libtpu: 0.0.40
codegen_flags: <defaults>
</compile_context>

<pallas_src>
import jax
import jax.numpy as jnp
from jax.experimental import pallas as pl
from jax.experimental.pallas import tpu as pltpu

_NH = 128       # fused + lane-padded head width (cls 6 + bbox 12 -> 128 lanes)
_LANE = 128
_SUBLANE = 8


def _round_up(x, m):
    return ((x + m - 1) // m) * m


def _rpn_kernel(xcol_ref, w1_ref, b1_ref, wh_ref, bh_ref, out_ref):
    # xcol_ref: (1, thw, Kp)   bf16 im2col'd input rows, Kp = round_up(9*Cin, 128)
    # w1_ref  : (Kp, Cmid_p)   bf16 3x3 conv weights (tap-major, zero-padded)
    # b1_ref  : (1, Cmid_p)    f32
    # wh_ref  : (Cmid_p, 128)  bf16 fused [cls | bbox | zero-pad] head weights
    # bh_ref  : (1, 128)       f32 fused head bias (zero-padded)
    # out_ref : (1, thw, 128)  bf16 lane-dense fused head output
    x = xcol_ref[0]                                               # (thw, Kp) bf16
    h = jnp.dot(x, w1_ref[...], preferred_element_type=jnp.float32)
    h = jnp.maximum(h + b1_ref[...], 0.0)                         # (thw, Cmid_p) f32
    y = jnp.dot(h.astype(jnp.bfloat16), wh_ref[...],
                preferred_element_type=jnp.float32) + bh_ref[...]
    out_ref[0] = y.astype(out_ref.dtype)


def _vmem_limits():
    """(vmem_limit_bytes, tile_budget_bytes) sized per TPU generation."""
    phys = 64 * 1024 * 1024                      # conservative default (v7x per-TC)
    try:
        info = pltpu.get_tpu_info()
        phys = int(getattr(info, "vmem_capacity_bytes", phys)) or phys
    except Exception:
        pass
    limit = min(int(phys * 3 // 4), 96 * 1024 * 1024)   # v7x ~48 MiB, v5e/v6e ~96 MiB
    budget = int(limit * 0.85)                           # headroom for Mosaic scratch
    return limit, budget


def _pick_hw_tile(hw, kp, cmid_p, budget_bytes, min_tiles=1, cap=2048):
    """Largest multiple-of-8 row tile whose double-buffered x/out blocks,
    f32 intermediates and resident weights fit the VMEM budget."""
    weight_bytes = 2 * 2 * (kp * cmid_p + cmid_p * _NH) + 2 * 4 * (cmid_p + _NH)
    # per output row: 2x bf16 x-block (4*kp) + 2x bf16 out-block (4*128)
    #                 + f32 intermediates with 2x margin (8*cmid_p)
    per_row = 4 * kp + 4 * _NH + 8 * cmid_p
    avail = max(budget_bytes - weight_bytes, _SUBLANE * per_row)
    thw = (avail // per_row) // _SUBLANE * _SUBLANE
    thw = max(_SUBLANE, min(thw, cap, _round_up(hw, _SUBLANE)))
    if min_tiles >= 2:
        half = _round_up(-(-hw // 2), _SUBLANE)
        if half < hw:                       # splitting into >=2 tiles is possible
            thw = min(thw, half)
    return thw


def _build_pallas_fn(B, n_tiles, thw, kp, cmid_p, vmem_limit, flops,
                     bytes_accessed, single_buffer_weights):
    wkw = {"pipeline_mode": pl.Buffered(1)} if single_buffer_weights else {}
    grid_spec = pltpu.PrefetchScalarGridSpec(
        num_scalar_prefetch=0,
        grid=(B, n_tiles),
        in_specs=[
            pl.BlockSpec((1, thw, kp), lambda b, t: (b, t, 0)),
            pl.BlockSpec((kp, cmid_p), lambda b, t: (0, 0), **wkw),
            pl.BlockSpec((1, cmid_p), lambda b, t: (0, 0), **wkw),
            pl.BlockSpec((cmid_p, _NH), lambda b, t: (0, 0), **wkw),
            pl.BlockSpec((1, _NH), lambda b, t: (0, 0), **wkw),
        ],
        out_specs=pl.BlockSpec((1, thw, _NH), lambda b, t: (b, t, 0)),
    )
    return pl.pallas_call(
        _rpn_kernel,
        out_shape=jax.ShapeDtypeStruct((B, n_tiles * thw, _NH), jnp.bfloat16),
        grid_spec=grid_spec,
        compiler_params=pltpu.CompilerParams(
            dimension_semantics=("parallel", "parallel"),
            vmem_limit_bytes=int(vmem_limit)),
        cost_estimate=pl.CostEstimate(
            flops=flops, transcendentals=0, bytes_accessed=bytes_accessed),
    )


def rpn_forward(x_nchw, params):
    """x_nchw: (B, Cin, H, W) f32. Returns (cls, bbox) in NCHW f32 like torch."""
    w1, b1 = params["w1"], params["b1"]            # (9*Cin, Cmid), (1, Cmid)
    wc, bc = params["w_cls"], params["b_cls"]      # (Cmid, 6), (1, 6)
    wb, bb = params["w_bbox"], params["b_bbox"]    # (Cmid, 12), (1, 12)

    B, Cin, H, W = x_nchw.shape
    K = 9 * Cin
    Cmid = w1.shape[1]
    Ccls = wc.shape[1]
    Cbox = wb.shape[1]
    HW = H * W

    Kp = _round_up(K, _LANE)
    Cmid_p = _round_up(Cmid, _LANE)

    vmem_limit, vmem_budget = _vmem_limits()
    min_tiles = 2 if B == 1 else 1                 # keep both v7x cores busy at B=1
    thw = _pick_hw_tile(HW, Kp, Cmid_p, vmem_budget, min_tiles=min_tiles)
    n_tiles = -(-HW // thw)
    HWp = n_tiles * thw

    # ---- wrapper-side im2col in bf16: NCHW -> NHWC -> pad -> (B, HWp, Kp) ----
    x = jnp.transpose(x_nchw, (0, 2, 3, 1)).astype(jnp.bfloat16)   # (B, H, W, Cin)
    xp = jnp.pad(x, ((0, 0), (1, 1), (1, 1), (0, 0)))              # (B, H+2, W+2, Cin)
    cols = [xp[:, dy:dy + H, dx:dx + W, :]
            for dy in range(3) for dx in range(3)]                 # 9 x (B, H, W, Cin)
    x_col = jnp.concatenate(cols, axis=-1).reshape(B, HW, K)
    x_col = jnp.pad(x_col, ((0, 0), (0, HWp - HW), (0, Kp - K)))   # zero rows/lanes

    # ---- pad conv weights + fuse / lane-pad the two 1x1 heads ----
    w1p = jnp.zeros((Kp, Cmid_p), jnp.bfloat16).at[:K, :Cmid].set(
        w1.astype(jnp.bfloat16))
    b1p = jnp.zeros((1, Cmid_p), jnp.float32).at[:, :Cmid].set(b1)
    w_head = jnp.zeros((Cmid_p, _NH), jnp.bfloat16)
    w_head = w_head.at[:Cmid, :Ccls].set(wc.astype(jnp.bfloat16))
    w_head = w_head.at[:Cmid, Ccls:Ccls + Cbox].set(wb.astype(jnp.bfloat16))
    b_head = jnp.zeros((1, _NH), jnp.float32)
    b_head = b_head.at[:, :Ccls].set(bc).at[:, Ccls:Ccls + Cbox].set(bb)

    flops = 2 * B * HWp * (Kp * Cmid_p + Cmid_p * _NH)
    bytes_accessed = int(2 * (x_col.size + w1p.size + w_head.size)
                         + 4 * (b1p.size + b_head.size)
                         + 2 * B * HWp * _NH)

    def _run(single_buffer_weights):
        fn = _build_pallas_fn(B, n_tiles, thw, Kp, Cmid_p, vmem_limit,
                              flops, bytes_accessed, single_buffer_weights)
        return fn(x_col, w1p, b1p, w_head, b_head)

    try:
        out = _run(True)
    except Exception:
        # pl.Buffered(1) (single-buffered resident weights) not supported by
        # this Pallas version -> fall back to plain double-buffered specs.
        out = _run(False)

    # ---- wrapper-side unpad / split / NCHW transpose ----
    out = out[:, :HW, :].reshape(B, H, W, _NH)
    cls_nchw = jnp.transpose(out[..., :Ccls].astype(jnp.float32), (0, 3, 1, 2))
    bbox_nchw = jnp.transpose(
        out[..., Ccls:Ccls + Cbox].astype(jnp.float32), (0, 3, 1, 2))
    return cls_nchw, bbox_nchw


def init_params(key, in_channels, mid_channels=256, n_anchor=3):
    """Deterministic init mirroring the torch module: N(0, 0.01) weights, zero bias."""
    k1, k2, k3 = jax.random.split(key, 3)
    # conv1: torch (Cmid, Cin, 3, 3) laid out as (3, 3, Cin, Cmid), flattened
    # tap-major to (9*Cin, Cmid) to match the wrapper's im2col ordering.
    w1 = 0.01 * jax.random.normal(k1, (3, 3, in_channels, mid_channels), jnp.float32)
    w1 = w1.reshape(9 * in_channels, mid_channels)
    # 1x1 heads: torch (Cout, Cmid, 1, 1) laid out as (Cmid, Cout).
    w_cls = 0.01 * jax.random.normal(k2, (mid_channels, n_anchor * 2), jnp.float32)
    w_bbox = 0.01 * jax.random.normal(k3, (mid_channels, n_anchor * 4), jnp.float32)
    return {
        "w1": w1,
        "b1": jnp.zeros((1, mid_channels), jnp.float32),
        "w_cls": w_cls,
        "b_cls": jnp.zeros((1, n_anchor * 2), jnp.float32),
        "w_bbox": w_bbox,
        "b_bbox": jnp.zeros((1, n_anchor * 4), jnp.float32),
    }


def _reference_forward(x_nchw, params):
    """Pure-JAX f32 reference (lax conv) for correctness checking."""
    B, Cin, H, W = x_nchw.shape
    Cmid = params["w1"].shape[1]
    x = jnp.transpose(x_nchw, (0, 2, 3, 1))  # NHWC
    w1_hwio = params["w1"].reshape(3, 3, Cin, Cmid)
    h = jax.lax.conv_general_dilated(
        x, w1_hwio, window_strides=(1, 1), padding="SAME",
        dimension_numbers=("NHWC", "HWIO", "NHWC"))
    h = jnp.maximum(h + params["b1"][0], 0.0)
    cls = jnp.einsum("bhwc,cd->bhwd", h, params["w_cls"]) + params["b_cls"][0]
    box = jnp.einsum("bhwc,cd->bhwd", h, params["w_bbox"]) + params["b_bbox"][0]
    return (jnp.transpose(cls, (0, 3, 1, 2)), jnp.transpose(box, (0, 3, 1, 2)))


if __name__ == "__main__":
    key = jax.random.PRNGKey(0)
    k_x, k_p = jax.random.split(key)

    B, Cin, H, W = 2, 4, 16, 16
    mid_channels = 256
    x = jax.random.normal(k_x, (B, Cin, H, W), jnp.float32)
    params = init_params(k_p, Cin, mid_channels=mid_channels, n_anchor=3)

    cls_out, bbox_out = rpn_forward(x, params)
    jax.block_until_ready((cls_out, bbox_out))

    # Sanity check against a pure-f32 JAX reference (bf16 operands -> ~1e-2 tol).
    cls_ref, bbox_ref = _reference_forward(x, params)
    assert cls_out.shape == (B, 6, H, W) and bbox_out.shape == (B, 12, H, W)
    assert jnp.allclose(cls_out, cls_ref, atol=2e-2, rtol=2e-2)
    assert jnp.allclose(bbox_out, bbox_ref, atol=2e-2, rtol=2e-2)

    print("KERNEL_OK")
</pallas_src>

<mosaic_0001>
module attributes {stable_mosaic.version = 11 : i64} {
  func.func @_rpn_kernel(%arg0: i32, %arg1: i32, %arg2: memref<1x256x128xbf16, #tpu.memory_space<vmem>>, %arg3: memref<128x256xbf16, #tpu.memory_space<vmem>>, %arg4: memref<1x256xf32, #tpu.memory_space<vmem>>, %arg5: memref<256x128xbf16, #tpu.memory_space<vmem>>, %arg6: memref<1x128xf32, #tpu.memory_space<vmem>>, %arg7: memref<1x256x128xbf16, #tpu.memory_space<vmem>>) attributes {dimension_semantics = [#tpu.dimension_semantics<parallel>, #tpu.dimension_semantics<parallel>], iteration_bounds = array<i64: 2, 1>, scalar_prefetch = 0 : i64, scratch_operands = 0 : i64, tpu.core_type = #tpu.core_type<tc>, window_params = [{transform_indices = @transform_0, window_bounds = array<i64: 1, 256, 128>}, {pipeline_mode = #tpu.pipeline_mode<synchronous>, transform_indices = @transform_1, window_bounds = array<i64: 128, 256>}, {pipeline_mode = #tpu.pipeline_mode<synchronous>, transform_indices = @transform_2, window_bounds = array<i64: 1, 256>}, {pipeline_mode = #tpu.pipeline_mode<synchronous>, transform_indices = @transform_3, window_bounds = array<i64: 256, 128>}, {pipeline_mode = #tpu.pipeline_mode<synchronous>, transform_indices = @transform_4, window_bounds = array<i64: 1, 128>}, {transform_indices = @transform_5, window_bounds = array<i64: 1, 256, 128>}]} {
    %c0 = arith.constant 0 : index
    %c0_0 = arith.constant 0 : index
    %c0_1 = arith.constant 0 : index
    %0 = vector.load %arg2[%c0, %c0_0, %c0_1] : memref<1x256x128xbf16, #tpu.memory_space<vmem>>, vector<1x256x128xbf16>
    %1 = vector.shape_cast %0 : vector<1x256x128xbf16> to vector<256x128xbf16>
    %c0_2 = arith.constant 0 : index
    %c0_3 = arith.constant 0 : index
    %2 = vector.load %arg3[%c0_2, %c0_3] : memref<128x256xbf16, #tpu.memory_space<vmem>>, vector<128x256xbf16>
    %cst = arith.constant dense<0.000000e+00> : vector<256x256xf32>
    %3 = tpu.matmul %1, %2, %cst {dimension_numbers = #tpu.dot_dimension_numbers<[1], [0], [0], [1], [0, 0, 1, 1], [], []>} : vector<256x128xbf16>, vector<128x256xbf16>, vector<256x256xf32> -> vector<256x256xf32>
    %c0_4 = arith.constant 0 : index
    %c0_5 = arith.constant 0 : index
    %4 = vector.load %arg4[%c0_4, %c0_5] : memref<1x256xf32, #tpu.memory_space<vmem>>, vector<1x256xf32>
    %5 = vector.broadcast %4 : vector<1x256xf32> to vector<256x256xf32>
    %6 = arith.addf %3, %5 : vector<256x256xf32>
    %cst_6 = arith.constant 0.000000e+00 : f32
    %7 = vector.broadcast %cst_6 : f32 to vector<256x256xf32>
    %8 = arith.maximumf %6, %7 : vector<256x256xf32>
    %9 = arith.truncf %8 : vector<256x256xf32> to vector<256x256xbf16>
    %c0_7 = arith.constant 0 : index
    %c0_8 = arith.constant 0 : index
    %10 = vector.load %arg5[%c0_7, %c0_8] : memref<256x128xbf16, #tpu.memory_space<vmem>>, vector<256x128xbf16>
    %cst_9 = arith.constant dense<0.000000e+00> : vector<256x128xf32>
    %11 = tpu.matmul %9, %10, %cst_9 {dimension_numbers = #tpu.dot_dimension_numbers<[1], [0], [0], [1], [0, 0, 1, 1], [], []>} : vector<256x256xbf16>, vector<256x128xbf16>, vector<256x128xf32> -> vector<256x128xf32>
    %c0_10 = arith.constant 0 : index
    %c0_11 = arith.constant 0 : index
    %12 = vector.load %arg6[%c0_10, %c0_11] : memref<1x128xf32, #tpu.memory_space<vmem>>, vector<1x128xf32>
    %13 = vector.broadcast %12 : vector<1x128xf32> to vector<256x128xf32>
    %14 = arith.addf %11, %13 : vector<256x128xf32>
    %15 = arith.truncf %14 : vector<256x128xf32> to vector<256x128xbf16>
    %c0_12 = arith.constant 0 : index
    %c0_13 = arith.constant 0 : index
    %c0_14 = arith.constant 0 : index
    %16 = vector.load %arg7[%c0_12, %c0_13, %c0_14] : memref<1x256x128xbf16, #tpu.memory_space<vmem>>, vector<1x256x128xbf16>
    %17 = vector.shape_cast %16 : vector<1x256x128xbf16> to vector<256x128xbf16>
    %18 = vector.shape_cast %15 : vector<256x128xbf16> to vector<1x256x128xbf16>
    tpu.vector_store %arg7[%c0_12, %c0_13, %c0_14], %18 {strides = array<i32>} : memref<1x256x128xbf16, #tpu.memory_space<vmem>>, vector<1x256x128xbf16>,
    return
  }
  func.func @transform_0(%arg0: i32, %arg1: i32) -> (i32, i32, i32) {
    %c0_i32 = arith.constant 0 : i32
    %c0_i32_0 = arith.constant 0 : i32
    return %arg0, %arg1, %c0_i32 : i32, i32, i32
  }
  func.func @transform_1(%arg0: i32, %arg1: i32) -> (i32, i32) {
    %c0_i32 = arith.constant 0 : i32
    %c0_i32_0 = arith.constant 0 : i32
    %c0_i32_1 = arith.constant 0 : i32
    return %c0_i32, %c0_i32_0 : i32, i32
  }
  func.func @transform_2(%arg0: i32, %arg1: i32) -> (i32, i32) {
    %c0_i32 = arith.constant 0 : i32
    %c0_i32_0 = arith.constant 0 : i32
    %c0_i32_1 = arith.constant 0 : i32
    return %c0_i32, %c0_i32_0 : i32, i32
  }
  func.func @transform_3(%arg0: i32, %arg1: i32) -> (i32, i32) {
    %c0_i32 = arith.constant 0 : i32
    %c0_i32_0 = arith.constant 0 : i32
    %c0_i32_1 = arith.constant 0 : i32
    return %c0_i32, %c0_i32_0 : i32, i32
  }
  func.func @transform_4(%arg0: i32, %arg1: i32) -> (i32, i32) {
    %c0_i32 = arith.constant 0 : i32
    %c0_i32_0 = arith.constant 0 : i32
    %c0_i32_1 = arith.constant 0 : i32
    return %c0_i32, %c0_i32_0 : i32, i32
  }
  func.func @transform_5(%arg0: i32, %arg1: i32) -> (i32, i32, i32) {
    %c0_i32 = arith.constant 0 : i32
    %c0_i32_0 = arith.constant 0 : i32
    return %arg0, %arg1, %c0_i32 : i32, i32, i32
  }
}

module attributes {stable_mosaic.version = 11 : i64} {
  func.func @_rpn_kernel(%arg0: i32, %arg1: i32, %arg2: memref<1x256x128xbf16, #tpu.memory_space<vmem>>, %arg3: memref<128x256xbf16, #tpu.memory_space<vmem>>, %arg4: memref<1x256xf32, #tpu.memory_space<vmem>>, %arg5: memref<256x128xbf16, #tpu.memory_space<vmem>>, %arg6: memref<1x128xf32, #tpu.memory_space<vmem>>, %arg7: memref<1x256x128xbf16, #tpu.memory_space<vmem>>) attributes {dimension_semantics = [#tpu.dimension_semantics<parallel>, #tpu.dimension_semantics<parallel>], iteration_bounds = array<i64: 2, 1>, scalar_prefetch = 0 : i64, scratch_operands = 0 : i64, tpu.core_type = #tpu.core_type<tc>, window_params = [{transform_indices = @transform_0, window_bounds = array<i64: 1, 256, 128>}, {pipeline_mode = #tpu.pipeline_mode<synchronous>, transform_indices = @transform_1, window_bounds = array<i64: 128, 256>}, {pipeline_mode = #tpu.pipeline_mode<synchronous>, transform_indices = @transform_2, window_bounds = array<i64: 1, 256>}, {pipeline_mode = #tpu.pipeline_mode<synchronous>, transform_indices = @transform_3, window_bounds = array<i64: 256, 128>}, {pipeline_mode = #tpu.pipeline_mode<synchronous>, transform_indices = @transform_4, window_bounds = array<i64: 1, 128>}, {transform_indices = @transform_5, window_bounds = array<i64: 1, 256, 128>}]} {
    %c0 = arith.constant 0 : index
    %c0_0 = arith.constant 0 : index
    %c0_1 = arith.constant 0 : index
    %0 = vector.load %arg2[%c0, %c0_0, %c0_1] : memref<1x256x128xbf16, #tpu.memory_space<vmem>>, vector<1x256x128xbf16>
    %1 = vector.shape_cast %0 : vector<1x256x128xbf16> to vector<256x128xbf16>
    %c0_2 = arith.constant 0 : index
    %c0_3 = arith.constant 0 : index
    %2 = vector.load %arg3[%c0_2, %c0_3] : memref<128x256xbf16, #tpu.memory_space<vmem>>, vector<128x256xbf16>
    %cst = arith.constant dense<0.000000e+00> : vector<256x256xf32>
    %3 = tpu.matmul %1, %2, %cst {dimension_numbers = #tpu.dot_dimension_numbers<[1], [0], [0], [1], [0, 0, 1, 1], [], []>} : vector<256x128xbf16>, vector<128x256xbf16>, vector<256x256xf32> -> vector<256x256xf32>
    %c0_4 = arith.constant 0 : index
    %c0_5 = arith.constant 0 : index
    %4 = vector.load %arg4[%c0_4, %c0_5] : memref<1x256xf32, #tpu.memory_space<vmem>>, vector<1x256xf32>
    %5 = vector.broadcast %4 : vector<1x256xf32> to vector<256x256xf32>
    %6 = arith.addf %3, %5 : vector<256x256xf32>
    %cst_6 = arith.constant 0.000000e+00 : f32
    %7 = vector.broadcast %cst_6 : f32 to vector<256x256xf32>
    %8 = arith.maximumf %6, %7 : vector<256x256xf32>
    %9 = arith.truncf %8 : vector<256x256xf32> to vector<256x256xbf16>
    %c0_7 = arith.constant 0 : index
    %c0_8 = arith.constant 0 : index
    %10 = vector.load %arg5[%c0_7, %c0_8] : memref<256x128xbf16, #tpu.memory_space<vmem>>, vector<256x128xbf16>
    %cst_9 = arith.constant dense<0.000000e+00> : vector<256x128xf32>
    %11 = tpu.matmul %9, %10, %cst_9 {dimension_numbers = #tpu.dot_dimension_numbers<[1], [0], [0], [1], [0, 0, 1, 1], [], []>} : vector<256x256xbf16>, vector<256x128xbf16>, vector<256x128xf32> -> vector<256x128xf32>
    %c0_10 = arith.constant 0 : index
    %c0_11 = arith.constant 0 : index
    %12 = vector.load %arg6[%c0_10, %c0_11] : memref<1x128xf32, #tpu.memory_space<vmem>>, vector<1x128xf32>
    %13 = vector.broadcast %12 : vector<1x128xf32> to vector<256x128xf32>
    %14 = arith.addf %11, %13 : vector<256x128xf32>
    %15 = arith.truncf %14 : vector<256x128xf32> to vector<256x128xbf16>
    %c0_12 = arith.constant 0 : index
    %c0_13 = arith.constant 0 : index
    %c0_14 = arith.constant 0 : index
    %16 = vector.load %arg7[%c0_12, %c0_13, %c0_14] : memref<1x256x128xbf16, #tpu.memory_space<vmem>>, vector<1x256x128xbf16>
    %17 = vector.shape_cast %16 : vector<1x256x128xbf16> to vector<256x128xbf16>
    %18 = vector.shape_cast %15 : vector<256x128xbf16> to vector<1x256x128xbf16>
    tpu.vector_store %arg7[%c0_12, %c0_13, %c0_14], %18 {strides = array<i32>} : memref<1x256x128xbf16, #tpu.memory_space<vmem>>, vector<1x256x128xbf16>,
    return
  }
  func.func @transform_0(%arg0: i32, %arg1: i32) -> (i32, i32, i32) {
    %c0_i32 = arith.constant 0 : i32
    %c0_i32_0 = arith.constant 0 : i32
    return %arg0, %arg1, %c0_i32 : i32, i32, i32
  }
  func.func @transform_1(%arg0: i32, %arg1: i32) -> (i32, i32) {
    %c0_i32 = arith.constant 0 : i32
    %c0_i32_0 = arith.constant 0 : i32
    %c0_i32_1 = arith.constant 0 : i32
    return %c0_i32, %c0_i32_0 : i32, i32
  }
  func.func @transform_2(%arg0: i32, %arg1: i32) -> (i32, i32) {
    %c0_i32 = arith.constant 0 : i32
    %c0_i32_0 = arith.constant 0 : i32
    %c0_i32_1 = arith.constant 0 : i32
    return %c0_i32, %c0_i32_0 : i32, i32
  }
  func.func @transform_3(%arg0: i32, %arg1: i32) -> (i32, i32) {
    %c0_i32 = arith.constant 0 : i32
    %c0_i32_0 = arith.constant 0 : i32
    %c0_i32_1 = arith.constant 0 : i32
    return %c0_i32, %c0_i32_0 : i32, i32
  }
  func.func @transform_4(%arg0: i32, %arg1: i32) -> (i32, i32) {
    %c0_i32 = arith.constant 0 : i32
    %c0_i32_0 = arith.constant 0 : i32
    %c0_i32_1 = arith.constant 0 : i32
    return %c0_i32, %c0_i32_0 : i32, i32
  }
  func.func @transform_5(%arg0: i32, %arg1: i32) -> (i32, i32, i32) {
    %c0_i32 = arith.constant 0 : i32
    %c0_i32_0 = arith.constant 0 : i32
    return %arg0, %arg1, %c0_i32 : i32, i32, i32
  }
}

</mosaic_0001>

<llo_original>
// kernel: tpu_custom_call.1
$region0: #{tpu_custom_call.1}
  #allocation0 [shape = 'u32[]', space=smem, size = 0x4, offset = 0x4, fixed_abs, tag = 'smem constant byte address 0x4 - core index']
  #allocation1 [shape = 'u32[144,128]{1,0:T(1,128)}', space=vmem, size = 0x12000, scoped, tag = 'internal scratch']
  %s0 = inlined_call_operand.hbm [shape: bf16[2,256,128], index: 0, kind: input, shape index: {}]
  %s1 = inlined_call_operand.hbm [shape: bf16[128,256], index: 1, kind: input, shape index: {}]
  %s2 = inlined_call_operand.vmem [shape: f32[1,256], index: 2, kind: input, shape index: {}]
  %s3 = inlined_call_operand.hbm [shape: bf16[256,128], index: 3, kind: input, shape index: {}]
  %s4 = inlined_call_operand.vmem [shape: f32[1,128], index: 4, kind: input, shape index: {}]
  %s5 = inlined_call_operand.hbm [shape: bf16[2,256,128], index: 5, kind: output, shape index: {}]
  %s6 = sld [smem:[#allocation0]]
  $region65: #{tpu_custom_call.1} parent=0
    _
  %s8 = ssub.s32 1, %s6
  %s9 = scalar_select 0, %s8, %s6
  $region1: #{tpu_custom_call.1} parent=0
    #allocation2 [shape = 'u8[131072]{0}', space=vmem, size = 0x20000, scoped, tag = 'input window, operand 0']
    #allocation3 [shape = 's32[2]{0}', space=sflag, size = 0x8, scoped, tag = 'scoped memory for tpu_custom_call.1']
    #allocation4 [shape = 's32[2]{0}', space=sflag, size = 0x8, scoped, tag = 'scoped memory for tpu_custom_call.1']
    #allocation5 [shape = 'u8[65536]{0}', space=vmem, size = 0x10000, scoped, tag = 'input window, operand 1, single buffered']
    #allocation6 [shape = 's32[1]{0}', space=sflag, size = 0x4, scoped, tag = 'scoped memory for tpu_custom_call.1']
    #allocation7 [shape = 'u8[65536]{0}', space=vmem, size = 0x10000, scoped, tag = 'input window, operand 3, single buffered']
    #allocation8 [shape = 'u8[131072]{0}', space=vmem, size = 0x20000, scoped, tag = 'output window, operand 0']
    %10 = vsyncpa [#allocation3], 0
    %s11 = scalar_lea.sflag [#allocation3], 1
    %12 = vsyncpa %s11, 0
    %13 = vsyncpa [#allocation6], 0
    %14 = vsyncpa [#allocation4], 0
    %s15 = scalar_lea.sflag [#allocation4], 1
    %16 = vsyncpa %s15, 0
    loop: start=0, step=1, limit=4
    $region2: #{tpu_custom_call.1} parent=1 // loop_pre_header
      _
    $region3: #{tpu_custom_call.1} parent=1 // loop_header
      %s18 = sphi 0, %s22
      %p19 = scmp.ge.s32.totalorder %s18, 4
      %s25 = sphi 0, %s37
      %s26 = sphi 0, %s33
      %s27 = sphi 0, %s25
      %s28 = sphi 0, %s26
      %s29 = sphi 0, %s27
      %s30 = sphi 0, %s28
      %s42 = sphi 0, %s44
      %s45 = sphi 0, %s42
      %s46 = sphi 0, %s45
      %s62 = sphi 0, %s46
      %s66 = sphi 0, %s66
      %s68 = sphi 0, %s66
      %s69 = sphi 0, %s68
      %s83 = sphi 0, %s69
      %s87 = sphi 0, %s87
      %s89 = sphi 0, %s87
      %s90 = sphi 0, %s89
      %s104 = sphi 0, %s90
      %s108 = sphi 0, %s108
      %s110 = sphi 0, %s108
      %s111 = sphi 0, %s110
      %s125 = sphi 0, %s111
      %s129 = sphi 0, %s129
      %s131 = sphi 0, %s129
      %s132 = sphi 0, %s131
      %s146 = sphi 0, %s132
      %s154 = sphi 0, %s156
      %s157 = sphi 0, %s154
      %s158 = sphi 0, %s157
      %s174 = sphi 0, %s158
    $region4: #{tpu_custom_call.1} parent=1 // loop_header_branch
      %21 = sbr.rel (%p19) target = $region8
    $region5: #{tpu_custom_call.1} parent=1 // loop_body
      %s23 = ssub.s32 %s18, 1
      %s24 = ssub.s32 %s18, 2
      %s31 = sadd.s32 1, %s26
      %p32 = scmp.ge.s32.totalorder %s31, 1
      %s33 = scalar_select %p32, 0, %s31
      %s34 = sadd.s32 1, %s25
      %s35 = scalar_select %p32, %s34, %s25
      %p36 = scmp.ge.s32.totalorder %s35, 2
      %s37 = scalar_select %p36, 0, %s35
      %s38 = ssub.s32 %s25, %s37
      %s39 = ssub.s32 %s26, %s33
      %s40 = sor.u32 %s38, %s39
      %p41 = scmp.eq.s32.totalorder %s40, 0
      %s43 = sadd.s32 %s42, 1
      %s44 = scalar_select %p41, %s42, %s43
      %p47 = pneg %p41
      %p48 = scmp.eq.s32.totalorder %s18, 1
      %p49 = por %p47, %p48
      %p50 = scmp.ne.s32.totalorder %s42, %s45
      %p51 = scmp.eq.s32.totalorder %s18, 0
      %p52 = por %p50, %p51
      %p53 = scmp.ne.s32.totalorder %s42, %s45
      %p54 = scmp.eq.s32.totalorder %s23, 1
      %p55 = por %p53, %p54
      %p56 = scmp.ne.s32.totalorder %s45, %s46
      %p57 = scmp.eq.s32.totalorder %s23, 0
      %p58 = por %p56, %p57
      %p59 = scmp.ne.s32.totalorder %s45, %s46
      %p60 = scmp.eq.s32.totalorder %s24, 1
      %p61 = por %p59, %p60
      %p63 = scmp.ne.s32.totalorder %s46, %s62
      %p64 = scmp.eq.s32.totalorder %s24, 0
      %p65 = por %p63, %p64
      %s67 = sadd.s32 %s66, 1
      %p70 = scmp.eq.s32.totalorder %s18, 1
      %p71 = scmp.ne.s32.totalorder %s66, %s68
      %p72 = scmp.eq.s32.totalorder %s18, 0
      %p73 = por %p71, %p72
      %p74 = scmp.ne.s32.totalorder %s66, %s68
      %p75 = scmp.eq.s32.totalorder %s23, 1
      %p76 = por %p74, %p75
      %p77 = scmp.ne.s32.totalorder %s68, %s69
      %p78 = scmp.eq.s32.totalorder %s23, 0
      %p79 = por %p77, %p78
      %p80 = scmp.ne.s32.totalorder %s68, %s69
      %p81 = scmp.eq.s32.totalorder %s24, 1
      %p82 = por %p80, %p81
      %p84 = scmp.ne.s32.totalorder %s69, %s83
      %p85 = scmp.eq.s32.totalorder %s24, 0
      %p86 = por %p84, %p85
      %s88 = sadd.s32 %s87, 1
      %p91 = scmp.eq.s32.totalorder %s18, 1
      %p92 = scmp.ne.s32.totalorder %s87, %s89
      %p93 = scmp.eq.s32.totalorder %s18, 0
      %p94 = por %p92, %p93
      %p95 = scmp.ne.s32.totalorder %s87, %s89
      %p96 = scmp.eq.s32.totalorder %s23, 1
      %p97 = por %p95, %p96
      %p98 = scmp.ne.s32.totalorder %s89, %s90
      %p99 = scmp.eq.s32.totalorder %s23, 0
      %p100 = por %p98, %p99
      %p101 = scmp.ne.s32.totalorder %s89, %s90
      %p102 = scmp.eq.s32.totalorder %s24, 1
      %p103 = por %p101, %p102
      %p105 = scmp.ne.s32.totalorder %s90, %s104
      %p106 = scmp.eq.s32.totalorder %s24, 0
      %p107 = por %p105, %p106
      %s109 = sadd.s32 %s108, 1
      %p112 = scmp.eq.s32.totalorder %s18, 1
      %p113 = scmp.ne.s32.totalorder %s108, %s110
      %p114 = scmp.eq.s32.totalorder %s18, 0
      %p115 = por %p113, %p114
      %p116 = scmp.ne.s32.totalorder %s108, %s110
      %p117 = scmp.eq.s32.totalorder %s23, 1
      %p118 = por %p116, %p117
      %p119 = scmp.ne.s32.totalorder %s110, %s111
      %p120 = scmp.eq.s32.totalorder %s23, 0
      %p121 = por %p119, %p120
      %p122 = scmp.ne.s32.totalorder %s110, %s111
      %p123 = scmp.eq.s32.totalorder %s24, 1
      %p124 = por %p122, %p123
      %p126 = scmp.ne.s32.totalorder %s111, %s125
      %p127 = scmp.eq.s32.totalorder %s24, 0
      %p128 = por %p126, %p127
      %s130 = sadd.s32 %s129, 1
      %p133 = scmp.eq.s32.totalorder %s18, 1
      %p134 = scmp.ne.s32.totalorder %s129, %s131
      %p135 = scmp.eq.s32.totalorder %s18, 0
      %p136 = por %p134, %p135
      %p137 = scmp.ne.s32.totalorder %s129, %s131
      %p138 = scmp.eq.s32.totalorder %s23, 1
      %p139 = por %p137, %p138
      %p140 = scmp.ne.s32.totalorder %s131, %s132
      %p141 = scmp.eq.s32.totalorder %s23, 0
      %p142 = por %p140, %p141
      %p143 = scmp.ne.s32.totalorder %s131, %s132
      %p144 = scmp.eq.s32.totalorder %s24, 1
      %p145 = por %p143, %p144
      %p147 = scmp.ne.s32.totalorder %s132, %s146
      %p148 = scmp.eq.s32.totalorder %s24, 0
      %p149 = por %p147, %p148
      %s150 = ssub.s32 %s25, %s37
      %s151 = ssub.s32 %s26, %s33
      %s152 = sor.u32 %s150, %s151
      %p153 = scmp.eq.s32.totalorder %s152, 0
      %s155 = sadd.s32 %s154, 1
      %s156 = scalar_select %p153, %s154, %s155
      %p159 = pneg %p153
      %p160 = scmp.eq.s32.totalorder %s18, 1
      %p161 = por %p159, %p160
      %p162 = scmp.ne.s32.totalorder %s154, %s157
      %p163 = scmp.eq.s32.totalorder %s18, 0
      %p164 = por %p162, %p163
      %p165 = scmp.ne.s32.totalorder %s154, %s157
      %p166 = scmp.eq.s32.totalorder %s23, 1
      %p167 = por %p165, %p166
      %p168 = scmp.ne.s32.totalorder %s157, %s158
      %p169 = scmp.eq.s32.totalorder %s23, 0
      %p170 = por %p168, %p169
      %p171 = scmp.ne.s32.totalorder %s157, %s158
      %p172 = scmp.eq.s32.totalorder %s24, 1
      %p173 = por %p171, %p172
      %p175 = scmp.ne.s32.totalorder %s158, %s174
      %p176 = scmp.eq.s32.totalorder %s24, 0
      %p177 = por %p175, %p176
      %p178 = scmp.le.s32.totalorder 1, %s18
      %p179 = scmp.lt.s32.totalorder %s18, 3
      %p180 = pnand %p178, %p179
      %p181 = pneg %p180
      // Predicated region
      $region9: #{tpu_custom_call.1} parent=5 // pred_check
        _
      $region10: #{tpu_custom_call.1} parent=5 // pred_check_branch
        %183 = sbr.rel (%p180) target = $region12
      $region11: #{tpu_custom_call.1} parent=5 // pred_region
        %s184 = ssub.s32 %s18, 1
        // Predicated region
        $region13: #{tpu_custom_call.1} parent=11 // pred_check
          %p185 = pneg %p79
        $region14: #{tpu_custom_call.1} parent=11 // pred_check_branch
          %187 = sbr.rel (%p185) target = $region16
        $region15: #{tpu_custom_call.1} parent=11 // pred_region
          %s189 = ssub.s32 2048, 2048
          %190 = vsyncadd [#allocation6], %s189
          %s191 = sshll.u32 [#allocation5], 4
          %s192 = int_to_ptr.vmem [resolvable:$true] %s191
          %197 = dma.hbm_to_vmem [thread:$0]  %s1, 2048, %s192, [#allocation6], 128, 128, 8
        $region16: #{tpu_custom_call.1} parent=11 // pred_fallthru
          _
        // Predicated region
        $region17: #{tpu_custom_call.1} parent=11 // pred_check
          %p198 = pneg %p100
        $region18: #{tpu_custom_call.1} parent=11 // pred_check_branch
          %200 = sbr.rel (%p198) target = $region20
        $region19: #{tpu_custom_call.1} parent=11 // pred_region
          _
        $region20: #{tpu_custom_call.1} parent=11 // pred_fallthru
          _
        // Predicated region
        $region21: #{tpu_custom_call.1} parent=11 // pred_check
          %p201 = pneg %p121
        $region22: #{tpu_custom_call.1} parent=11 // pred_check_branch
          %203 = sbr.rel (%p201) target = $region24
        $region23: #{tpu_custom_call.1} parent=11 // pred_region
          %s205 = ssub.s32 2048, 2048
          %206 = vsyncadd [#allocation6], %s205
          %s207 = sshll.u32 [#allocation7], 4
          %s208 = int_to_ptr.vmem [resolvable:$true] %s207
          %213 = dma.hbm_to_vmem [thread:$0]  %s3, 2048, %s208, [#allocation6], 64, 64, 4
        $region24: #{tpu_custom_call.1} parent=11 // pred_fallthru
          _
        // Predicated region
        $region25: #{tpu_custom_call.1} parent=11 // pred_check
          %p214 = pneg %p142
        $region26: #{tpu_custom_call.1} parent=11 // pred_check_branch
          %216 = sbr.rel (%p214) target = $region28
        $region27: #{tpu_custom_call.1} parent=11 // pred_region
          _
        $region28: #{tpu_custom_call.1} parent=11 // pred_fallthru
          _
      $region12: #{tpu_custom_call.1} parent=5 // pred_fallthru
        _
      %p217 = scmp.lt.s32.totalorder %s18, 2
      // Predicated region
      $region29: #{tpu_custom_call.1} parent=5 // pred_check
        %p218 = pneg %p217
      $region30: #{tpu_custom_call.1} parent=5 // pred_check_branch
        %220 = sbr.rel (%p218) target = $region32
      $region31: #{tpu_custom_call.1} parent=5 // pred_region
        // Predicated region
        $region33: #{tpu_custom_call.1} parent=31 // pred_check
          %p221 = pneg %p52
        $region34: #{tpu_custom_call.1} parent=31 // pred_check_branch
          %223 = sbr.rel (%p221) target = $region36
        $region35: #{tpu_custom_call.1} parent=31 // pred_region
          %s224 = sand.u32 %s42, 1
          %s225 = scalar_lea.sflag [#allocation3], %s224
          %s226 = sand.u32 %s42, 1
          %s227 = smul.addr %s226, 128
          %s228 = scalar_lea.vmem [#allocation2], %s227
          %s229 = smul.u32 32, %s26
          %s231 = ssub.s32 2048, 2048
          %232 = vsyncadd %s225, %s231
          %s233 = smul.addr %s25, 32
          %s234 = sadd.s32 %s229, %s233
          %s235 = smul.addr %s234, 64
          %s236 = scalar_lea.hbm %s0, %s235
          %s237 = sshll.u32 %s228, 4
          %s238 = int_to_ptr.vmem [resolvable:$true] %s237
          %243 = dma.hbm_to_vmem [thread:$0]  %s236, 2048, %s238, %s225, 64, 64, 4
        $region36: #{tpu_custom_call.1} parent=31 // pred_fallthru
          _
      $region32: #{tpu_custom_call.1} parent=5 // pred_fallthru
        _
      %p244 = scmp.le.s32.totalorder 1, %s18
      %p245 = scmp.lt.s32.totalorder %s18, 3
      %p246 = pnand %p244, %p245
      %p247 = pneg %p246
      // Predicated region
      $region37: #{tpu_custom_call.1} parent=5 // pred_check
        _
      $region38: #{tpu_custom_call.1} parent=5 // pred_check_branch
        %249 = sbr.rel (%p246) target = $region40
      $region39: #{tpu_custom_call.1} parent=5 // pred_region
        %s250 = ssub.s32 %s18, 1
        %s251 = sand.u32 %s45, 1
        %s252 = scalar_lea.sflag [#allocation3], %s251
        %s253 = sand.u32 %s45, 1
        %s254 = smul.addr %s253, 128
        %s255 = scalar_lea.vmem [#allocation2], %s254
        // Predicated region
        $region41: #{tpu_custom_call.1} parent=39 // pred_check
          %p256 = pneg %p58
        $region42: #{tpu_custom_call.1} parent=39 // pred_check_branch
          %258 = sbr.rel (%p256) target = $region44
        $region43: #{tpu_custom_call.1} parent=39 // pred_region
          %259 = dma.done %s252, 2048
        $region44: #{tpu_custom_call.1} parent=39 // pred_fallthru
          _
        // Predicated region
        $region45: #{tpu_custom_call.1} parent=39 // pred_check
          %p260 = pneg %p79
        $region46: #{tpu_custom_call.1} parent=39 // pred_check_branch
          %262 = sbr.rel (%p260) target = $region48
        $region47: #{tpu_custom_call.1} parent=39 // pred_region
          %263 = dma.done [#allocation6], 2048
        $region48: #{tpu_custom_call.1} parent=39 // pred_fallthru
          _
        // Predicated region
        $region49: #{tpu_custom_call.1} parent=39 // pred_check
          %p264 = pneg %p121
        $region50: #{tpu_custom_call.1} parent=39 // pred_check_branch
          %266 = sbr.rel (%p264) target = $region52
        $region51: #{tpu_custom_call.1} parent=39 // pred_region
          %267 = dma.done [#allocation6], 2048
        $region52: #{tpu_custom_call.1} parent=39 // pred_fallthru
          _
        %s268 = sand.u32 %s45, 1
        %s269 = scalar_lea.sflag [#allocation3], %s268
        %s270 = sand.u32 %s45, 1
        %s271 = smul.addr %s270, 128
        %s272 = scalar_lea.vmem [#allocation2], %s271
        %p273 = pneg %p58
        %p274 = pneg %p55
        %p275 = pneg %p79
        %p276 = pneg %p76
        %p277 = pneg %p100
        %p278 = pneg %p97
        %p279 = pneg %p121
        %p280 = pneg %p118
        %p281 = pneg %p142
        %p282 = pneg %p139
        %p283 = pneg %p170
        %p284 = pneg %p167
        %s285 = sand.u32 %s157, 1
        %s286 = scalar_lea.sflag [#allocation4], %s285
        %s287 = sand.u32 %s157, 1
        %s288 = smul.addr %s287, 128
        %s289 = scalar_lea.vmem [#allocation8], %s288
        %s290 = smul.u32 32, %s28
        %s291 = smul.u32 32, %s28
        %v293 = vld [vmem:[%s255] sm:$0xf]
        %v294 = vld [vmem:[%s255 + $0x4] sm:$0xf]
        %v295 = vld [vmem:[%s255 + $0x8] sm:$0xf]
        %v296 = vld [vmem:[%s255 + $0xc] sm:$0xf]
        %v297 = vld [vmem:[%s255 + $0x10] sm:$0xf]
        %v298 = vld [vmem:[%s255 + $0x14] sm:$0xf]
        %v299 = vld [vmem:[%s255 + $0x18] sm:$0xf]
        %v300 = vld [vmem:[%s255 + $0x1c] sm:$0xf]
        %v301 = vld [vmem:[%s255 + $0x20] sm:$0xf]
        %v302 = vld [vmem:[%s255 + $0x24] sm:$0xf]
        %v303 = vld [vmem:[%s255 + $0x28] sm:$0xf]
        %v304 = vld [vmem:[%s255 + $0x2c] sm:$0xf]
        %v305 = vld [vmem:[%s255 + $0x30] sm:$0xf]
        %v306 = vld [vmem:[%s255 + $0x34] sm:$0xf]
        %v307 = vld [vmem:[%s255 + $0x38] sm:$0xf]
        %v308 = vld [vmem:[%s255 + $0x3c] sm:$0xf]
        %v309 = vld [vmem:[%s255 + $0x40] sm:$0xf]
        %v310 = vld [vmem:[%s255 + $0x44] sm:$0xf]
        %v311 = vld [vmem:[%s255 + $0x48] sm:$0xf]
        %v312 = vld [vmem:[%s255 + $0x4c] sm:$0xf]
        %v313 = vld [vmem:[%s255 + $0x50] sm:$0xf]
        %v314 = vld [vmem:[%s255 + $0x54] sm:$0xf]
        %v315 = vld [vmem:[%s255 + $0x58] sm:$0xf]
        %v316 = vld [vmem:[%s255 + $0x5c] sm:$0xf]
        %v317 = vld [vmem:[%s255 + $0x60] sm:$0xf]
        %v318 = vld [vmem:[%s255 + $0x64] sm:$0xf]
        %v319 = vld [vmem:[%s255 + $0x68] sm:$0xf]
        %v320 = vld [vmem:[%s255 + $0x6c] sm:$0xf]
        %v321 = vld [vmem:[%s255 + $0x70] sm:$0xf]
        %v322 = vld [vmem:[%s255 + $0x74] sm:$0xf]
        %v323 = vld [vmem:[%s255 + $0x78] sm:$0xf]
        %v324 = vld [vmem:[%s255 + $0x7c] sm:$0xf]
        %v325 = vld [vmem:[#allocation5] sm:$0xff]
        %v326 = vld [vmem:[#allocation5 + $0x8] sm:$0xff]
        %v327 = vld [vmem:[#allocation5 + $0x10] sm:$0xff]
        %v328 = vld [vmem:[#allocation5 + $0x18] sm:$0xff]
        %v329 = vld [vmem:[#allocation5 + $0x20] sm:$0xff]
        %v330 = vld [vmem:[#allocation5 + $0x28] sm:$0xff]
        %v331 = vld [vmem:[#allocation5 + $0x30] sm:$0xff]
        %v332 = vld [vmem:[#allocation5 + $0x38] sm:$0xff]
        %v333 = vld [vmem:[#allocation5 + $0x40] sm:$0xff]
        %v334 = vld [vmem:[#allocation5 + $0x48] sm:$0xff]
        %v335 = vld [vmem:[#allocation5 + $0x50] sm:$0xff]
        %v336 = vld [vmem:[#allocation5 + $0x58] sm:$0xff]
        %v337 = vld [vmem:[#allocation5 + $0x60] sm:$0xff]
        %v338 = vld [vmem:[#allocation5 + $0x68] sm:$0xff]
        %v339 = vld [vmem:[#allocation5 + $0x70] sm:$0xff]
        %v340 = vld [vmem:[#allocation5 + $0x78] sm:$0xff]
        %v341 = vld [vmem:[%s2] sm:$0x3]
        %v343 = vlaneseq
        %v344 = vshrl.u32 %v343, 7
        %v345 = vsub.s32 0, %v344
        %v346 = vrot.slane %v341, %v345
        %v347 = vlaneseq
        %v348 = vshrl.u32 %v347, 7
        %v349 = vsub.s32 1, %v348
        %v350 = vrot.slane %v341, %v349
        %v385 = vunpack.c.l.b16 %v293
        %v386 = vunpack.c.l.b16 %v294
        %v387 = vunpack.c.l.b16 %v295
        %v388 = vunpack.c.l.b16 %v296
        %v389 = vunpack.c.l.b16 %v297
        %v390 = vunpack.c.l.b16 %v298
        %v391 = vunpack.c.l.b16 %v299
        %v392 = vunpack.c.l.b16 %v300
        %v393 = vunpack.c.l.b16 %v301
        %v394 = vunpack.c.l.b16 %v302
        %v395 = vunpack.c.l.b16 %v303
        %v396 = vunpack.c.l.b16 %v304
        %v397 = vunpack.c.l.b16 %v305
        %v398 = vunpack.c.l.b16 %v306
        %v399 = vunpack.c.l.b16 %v307
        %v400 = vunpack.c.l.b16 %v308
        %v401 = vunpack.c.l.b16 %v309
        %v402 = vunpack.c.l.b16 %v310
        %v403 = vunpack.c.l.b16 %v311
        %v404 = vunpack.c.l.b16 %v312
        %v405 = vunpack.c.l.b16 %v313
        %v406 = vunpack.c.l.b16 %v314
        %v407 = vunpack.c.l.b16 %v315
        %v408 = vunpack.c.l.b16 %v316
        %v409 = vunpack.c.l.b16 %v317
        %v410 = vunpack.c.l.b16 %v318
        %v411 = vunpack.c.l.b16 %v319
        %v412 = vunpack.c.l.b16 %v320
        %v413 = vunpack.c.l.b16 %v321
        %v414 = vunpack.c.l.b16 %v322
        %v415 = vunpack.c.l.b16 %v323
        %v416 = vunpack.c.l.b16 %v324
        %v417 = vpack.c.b16 %v386, %v385
        %v418 = vpack.c.b16 %v388, %v387
        %v419 = vpack.c.b16 %v390, %v389
        %v420 = vpack.c.b16 %v392, %v391
        %v421 = vpack.c.b16 %v394, %v393
        %v422 = vpack.c.b16 %v396, %v395
        %v423 = vpack.c.b16 %v398, %v397
        %v424 = vpack.c.b16 %v400, %v399
        %v425 = vpack.c.b16 %v402, %v401
        %v426 = vpack.c.b16 %v404, %v403
        %v427 = vpack.c.b16 %v406, %v405
        %v428 = vpack.c.b16 %v408, %v407
        %v429 = vpack.c.b16 %v410, %v409
        %v430 = vpack.c.b16 %v412, %v411
        %v431 = vpack.c.b16 %v414, %v413
        %v432 = vpack.c.b16 %v416, %v415
        %v465 = vunpack.c.l.b16 %v325
        %v466 = vunpack.c.h.b16 %v325
        %v467 = vunpack.c.l.b16 %v326
        %v468 = vunpack.c.h.b16 %v326
        %v469 = vunpack.c.l.b16 %v327
        %v470 = vunpack.c.h.b16 %v327
        %v471 = vunpack.c.l.b16 %v328
        %v472 = vunpack.c.h.b16 %v328
        %v473 = vunpack.c.l.b16 %v329
        %v474 = vunpack.c.h.b16 %v329
        %v475 = vunpack.c.l.b16 %v330
        %v476 = vunpack.c.h.b16 %v330
        %v477 = vunpack.c.l.b16 %v331
        %v478 = vunpack.c.h.b16 %v331
        %v479 = vunpack.c.l.b16 %v332
        %v480 = vunpack.c.h.b16 %v332
        %v481 = vunpack.c.l.b16 %v333
        %v482 = vunpack.c.h.b16 %v333
        %v483 = vunpack.c.l.b16 %v334
        %v484 = vunpack.c.h.b16 %v334
        %v485 = vunpack.c.l.b16 %v335
        %v486 = vunpack.c.h.b16 %v335
        %v487 = vunpack.c.l.b16 %v336
        %v488 = vunpack.c.h.b16 %v336
        %v489 = vunpack.c.l.b16 %v337
        %v490 = vunpack.c.h.b16 %v337
        %v491 = vunpack.c.l.b16 %v338
        %v492 = vunpack.c.h.b16 %v338
        %v493 = vunpack.c.l.b16 %v339
        %v494 = vunpack.c.h.b16 %v339
        %v495 = vunpack.c.l.b16 %v340
        %v496 = vunpack.c.h.b16 %v340
        %v497 = vpack.c.b16 %v467, %v465
        %v498 = vpack.c.b16 %v468, %v466
        %v499 = vpack.c.b16 %v471, %v469
        %v500 = vpack.c.b16 %v472, %v470
        %v501 = vpack.c.b16 %v475, %v473
        %v502 = vpack.c.b16 %v476, %v474
        %v503 = vpack.c.b16 %v479, %v477
        %v504 = vpack.c.b16 %v480, %v478
        %v505 = vpack.c.b16 %v483, %v481
        %v506 = vpack.c.b16 %v484, %v482
        %v507 = vpack.c.b16 %v487, %v485
        %v508 = vpack.c.b16 %v488, %v486
        %v509 = vpack.c.b16 %v491, %v489
        %v510 = vpack.c.b16 %v492, %v490
        %v511 = vpack.c.b16 %v495, %v493
        %v512 = vpack.c.b16 %v496, %v494
        %529 = vmatprep.subr.bf16.mxu0 %v512
        %530 = vmatpush1.bf16.msra.mxu0 %v511
        %531 = vmatprep.subr.bf16.mxu0 %v510
        %532 = vmatpush1.bf16.msra.mxu0 %v509
        %533 = vmatprep.subr.bf16.mxu0 %v508
        %534 = vmatpush1.bf16.msra.mxu0 %v507
        %535 = vmatprep.subr.bf16.mxu0 %v506
        %536 = vmatpush1.bf16.msra.mxu0 %v505
        %537 = vmatprep.subr.bf16.mxu0 %v504
        %538 = vmatpush1.bf16.msra.mxu0 %v503
        %539 = vmatprep.subr.bf16.mxu0 %v502
        %540 = vmatpush1.bf16.msra.mxu0 %v501
        %541 = vmatprep.subr.bf16.mxu0 %v500
        %542 = vmatpush1.bf16.msra.mxu0 %v499
        %543 = vmatprep.subr.bf16.mxu0 %v498
        %544 = vmatpush1.bf16.msra.mxu0 %v497
        %545 = vmatprep.subr.bf16.mxu0 0
        %546 = vmatpush2.bf16.msra.mxu0 0
        %547 = vmatprep.subr.bf16.mxu0 0
        %548 = vmatpush2.bf16.msra.mxu0 0
        %549 = vmatprep.subr.bf16.mxu0 0
        %550 = vmatpush2.bf16.msra.mxu0 0
        %551 = vmatprep.subr.bf16.mxu0 0
        %552 = vmatpush2.bf16.msra.mxu0 0
        %553 = vmatprep.subr.bf16.mxu0 0
        %554 = vmatpush2.bf16.msra.mxu0 0
        %555 = vmatprep.subr.bf16.mxu0 0
        %556 = vmatpush2.bf16.msra.mxu0 0
        %557 = vmatprep.subr.bf16.mxu0 0
        %558 = vmatpush2.bf16.msra.mxu0 0
        %559 = vmatprep.subr.bf16.mxu0 0
        %560 = vmatpush2.bf16.msra.mxu0 0
        %561 = vmatprep.mubr.bf16.mxu0 0
        %562 = vmatmul.mubr.bf16.gmra.mxu0 %v417
        %v563 = vpop.f32.mrf.mxu0
        %v564 = vadd.f32 %v346, %v563
        %v565 = vpop.f32.mrf.mxu0
        %v566 = vadd.f32 %v350, %v565
        %v567 = vpop.f32.mrf.mxu0
        %v568 = vadd.f32 %v346, %v567
        %v569 = vpop.f32.mrf.mxu0
        %v570 = vadd.f32 %v350, %v569
        %571 = vmatprep.mubr.bf16.mxu0 0
        %572 = vmatmul.mubr.bf16.gmra.mxu0 %v418
        %v573 = vpop.f32.mrf.mxu0
        %v574 = vadd.f32 %v346, %v573
        %v575 = vpop.f32.mrf.mxu0
        %v576 = vadd.f32 %v350, %v575
        %v577 = vpop.f32.mrf.mxu0
        %v578 = vadd.f32 %v346, %v577
        %v579 = vpop.f32.mrf.mxu0
        %v580 = vadd.f32 %v350, %v579
        %581 = vmatprep.mubr.bf16.mxu0 0
        %582 = vmatmul.mubr.bf16.gmra.mxu0 %v419
        %v583 = vpop.f32.mrf.mxu0
        %v584 = vadd.f32 %v346, %v583
        %v585 = vpop.f32.mrf.mxu0
        %v586 = vadd.f32 %v350, %v585
        %v587 = vpop.f32.mrf.mxu0
        %v588 = vadd.f32 %v346, %v587
        %v589 = vpop.f32.mrf.mxu0
        %v590 = vadd.f32 %v350, %v589
        %591 = vmatprep.mubr.bf16.mxu0 0
        %592 = vmatmul.mubr.bf16.gmra.mxu0 %v420
        %v593 = vpop.f32.mrf.mxu0
        %v594 = vadd.f32 %v346, %v593
        %v595 = vpop.f32.mrf.mxu0
        %v596 = vadd.f32 %v350, %v595
        %v597 = vpop.f32.mrf.mxu0
        %v598 = vadd.f32 %v346, %v597
        %v599 = vpop.f32.mrf.mxu0
        %v600 = vadd.f32 %v350, %v599
        %601 = vmatprep.mubr.bf16.mxu0 0
        %602 = vmatmul.mubr.bf16.gmra.mxu0 %v421
        %v603 = vpop.f32.mrf.mxu0
        %v604 = vadd.f32 %v346, %v603
        %v605 = vpop.f32.mrf.mxu0
        %v606 = vadd.f32 %v350, %v605
        %v607 = vpop.f32.mrf.mxu0
        %v608 = vadd.f32 %v346, %v607
        %v609 = vpop.f32.mrf.mxu0
        %v610 = vadd.f32 %v350, %v609
        %611 = vmatprep.mubr.bf16.mxu0 0
        %612 = vmatmul.mubr.bf16.gmra.mxu0 %v422
        %v613 = vpop.f32.mrf.mxu0
        %v614 = vadd.f32 %v346, %v613
        %v615 = vpop.f32.mrf.mxu0
        %v616 = vadd.f32 %v350, %v615
        %v617 = vpop.f32.mrf.mxu0
        %v618 = vadd.f32 %v346, %v617
        %v619 = vpop.f32.mrf.mxu0
        %v620 = vadd.f32 %v350, %v619
        %621 = vmatprep.mubr.bf16.mxu0 0
        %622 = vmatmul.mubr.bf16.gmra.mxu0 %v423
        %v623 = vpop.f32.mrf.mxu0
        %v624 = vadd.f32 %v346, %v623
        %v625 = vpop.f32.mrf.mxu0
        %v626 = vadd.f32 %v350, %v625
        %v627 = vpop.f32.mrf.mxu0
        %v628 = vadd.f32 %v346, %v627
        %v629 = vpop.f32.mrf.mxu0
        %v630 = vadd.f32 %v350, %v629
        %631 = vmatprep.mubr.bf16.mxu0 0
        %632 = vmatmul.mubr.bf16.gmra.mxu0 %v424
        %v633 = vpop.f32.mrf.mxu0
        %v634 = vadd.f32 %v346, %v633
        %v635 = vpop.f32.mrf.mxu0
        %v636 = vadd.f32 %v350, %v635
        %v637 = vpop.f32.mrf.mxu0
        %v638 = vadd.f32 %v346, %v637
        %v639 = vpop.f32.mrf.mxu0
        %v640 = vadd.f32 %v350, %v639
        %641 = vmatprep.mubr.bf16.mxu0 0
        %642 = vmatmul.mubr.bf16.gmra.mxu0 %v425
        %v643 = vpop.f32.mrf.mxu0
        %v644 = vadd.f32 %v346, %v643
        %v645 = vpop.f32.mrf.mxu0
        %v646 = vadd.f32 %v350, %v645
        %v647 = vpop.f32.mrf.mxu0
        %v648 = vadd.f32 %v346, %v647
        %v649 = vpop.f32.mrf.mxu0
        %v650 = vadd.f32 %v350, %v649
        %651 = vmatprep.mubr.bf16.mxu0 0
        %652 = vmatmul.mubr.bf16.gmra.mxu0 %v426
        %v653 = vpop.f32.mrf.mxu0
        %v654 = vadd.f32 %v346, %v653
        %v655 = vpop.f32.mrf.mxu0
        %v656 = vadd.f32 %v350, %v655
        %v657 = vpop.f32.mrf.mxu0
        %v658 = vadd.f32 %v346, %v657
        %v659 = vpop.f32.mrf.mxu0
        %v660 = vadd.f32 %v350, %v659
        %661 = vmatprep.mubr.bf16.mxu0 0
        %662 = vmatmul.mubr.bf16.gmra.mxu0 %v427
        %v663 = vpop.f32.mrf.mxu0
        %v664 = vadd.f32 %v346, %v663
        %v665 = vpop.f32.mrf.mxu0
        %v666 = vadd.f32 %v350, %v665
        %v667 = vpop.f32.mrf.mxu0
        %v668 = vadd.f32 %v346, %v667
        %v669 = vpop.f32.mrf.mxu0
        %v670 = vadd.f32 %v350, %v669
        %671 = vmatprep.mubr.bf16.mxu0 0
        %672 = vmatmul.mubr.bf16.gmra.mxu0 %v428
        %v673 = vpop.f32.mrf.mxu0
        %v674 = vadd.f32 %v346, %v673
        %v675 = vpop.f32.mrf.mxu0
        %v676 = vadd.f32 %v350, %v675
        %v677 = vpop.f32.mrf.mxu0
        %v678 = vadd.f32 %v346, %v677
        %v679 = vpop.f32.mrf.mxu0
        %v680 = vadd.f32 %v350, %v679
        %681 = vmatprep.mubr.bf16.mxu0 0
        %682 = vmatmul.mubr.bf16.gmra.mxu0 %v429
        %v683 = vpop.f32.mrf.mxu0
        %v684 = vadd.f32 %v346, %v683
        %v685 = vpop.f32.mrf.mxu0
        %v686 = vadd.f32 %v350, %v685
        %v687 = vpop.f32.mrf.mxu0
        %v688 = vadd.f32 %v346, %v687
        %v689 = vpop.f32.mrf.mxu0
        %v690 = vadd.f32 %v350, %v689
        %691 = vmatprep.mubr.bf16.mxu0 0
        %692 = vmatmul.mubr.bf16.gmra.mxu0 %v430
        %v693 = vpop.f32.mrf.mxu0
        %v694 = vadd.f32 %v346, %v693
        %v695 = vpop.f32.mrf.mxu0
        %v696 = vadd.f32 %v350, %v695
        %v697 = vpop.f32.mrf.mxu0
        %v698 = vadd.f32 %v346, %v697
        %v699 = vpop.f32.mrf.mxu0
        %v700 = vadd.f32 %v350, %v699
        %701 = vmatprep.mubr.bf16.mxu0 0
        %702 = vmatmul.mubr.bf16.gmra.mxu0 %v431
        %v703 = vpop.f32.mrf.mxu0
        %v704 = vadd.f32 %v346, %v703
        %v705 = vpop.f32.mrf.mxu0
        %v706 = vadd.f32 %v350, %v705
        %v707 = vpop.f32.mrf.mxu0
        %v708 = vadd.f32 %v346, %v707
        %v709 = vpop.f32.mrf.mxu0
        %v710 = vadd.f32 %v350, %v709
        %711 = vmatprep.mubr.bf16.mxu0 0
        %712 = vmatmul.mubr.bf16.gmra.mxu0 %v432
        %v713 = vpop.f32.mrf.mxu0
        %v714 = vadd.f32 %v346, %v713
        %v715 = vpop.f32.mrf.mxu0
        %v716 = vadd.f32 %v350, %v715
        %v717 = vpop.f32.mrf.mxu0
        %v718 = vadd.f32 %v346, %v717
        %v719 = vpop.f32.mrf.mxu0
        %v720 = vadd.f32 %v350, %v719
        %721 = vdwg.mxu0
        %v722 = vmax.f32 %v564, 0.0
        %v723 = vmax.f32 %v566, 0.0
        %v724 = vmax.f32 %v568, 0.0
        %v725 = vmax.f32 %v570, 0.0
        %v726 = vmax.f32 %v574, 0.0
        %v727 = vmax.f32 %v576, 0.0
        %v728 = vmax.f32 %v578, 0.0
        %v729 = vmax.f32 %v580, 0.0
        %v730 = vmax.f32 %v584, 0.0
        %v731 = vmax.f32 %v586, 0.0
        %v732 = vmax.f32 %v588, 0.0
        %v733 = vmax.f32 %v590, 0.0
        %v734 = vmax.f32 %v594, 0.0
        %v735 = vmax.f32 %v596, 0.0
        %v736 = vmax.f32 %v598, 0.0
        %v737 = vmax.f32 %v600, 0.0
        %v738 = vmax.f32 %v604, 0.0
        %v739 = vmax.f32 %v606, 0.0
        %v740 = vmax.f32 %v608, 0.0
        %v741 = vmax.f32 %v610, 0.0
        %v742 = vmax.f32 %v614, 0.0
        %v743 = vmax.f32 %v616, 0.0
        %v744 = vmax.f32 %v618, 0.0
        %v745 = vmax.f32 %v620, 0.0
        %v746 = vmax.f32 %v624, 0.0
        %v747 = vmax.f32 %v626, 0.0
        %v748 = vmax.f32 %v628, 0.0
        %v749 = vmax.f32 %v630, 0.0
        %v750 = vmax.f32 %v634, 0.0
        %v751 = vmax.f32 %v636, 0.0
        %v752 = vmax.f32 %v638, 0.0
        %v753 = vmax.f32 %v640, 0.0
        %v754 = vmax.f32 %v644, 0.0
        %v755 = vmax.f32 %v646, 0.0
        %v756 = vmax.f32 %v648, 0.0
        %v757 = vmax.f32 %v650, 0.0
        %v758 = vmax.f32 %v654, 0.0
        %v759 = vmax.f32 %v656, 0.0
        %v760 = vmax.f32 %v658, 0.0
        %v761 = vmax.f32 %v660, 0.0
        %v762 = vmax.f32 %v664, 0.0
        %v763 = vmax.f32 %v666, 0.0
        %v764 = vmax.f32 %v668, 0.0
        %v765 = vmax.f32 %v670, 0.0
        %v766 = vmax.f32 %v674, 0.0
        %v767 = vmax.f32 %v676, 0.0
        %v768 = vmax.f32 %v678, 0.0
        %v769 = vmax.f32 %v680, 0.0
        %v770 = vmax.f32 %v684, 0.0
        %v771 = vmax.f32 %v686, 0.0
        %v772 = vmax.f32 %v688, 0.0
        %v773 = vmax.f32 %v690, 0.0
        %v774 = vmax.f32 %v694, 0.0
        %v775 = vmax.f32 %v696, 0.0
        %v776 = vmax.f32 %v698, 0.0
        %v777 = vmax.f32 %v700, 0.0
        %v778 = vmax.f32 %v704, 0.0
        %v779 = vmax.f32 %v706, 0.0
        %v780 = vmax.f32 %v708, 0.0
        %v781 = vmax.f32 %v710, 0.0
        %v782 = vmax.f32 %v714, 0.0
        %v783 = vmax.f32 %v716, 0.0
        %v784 = vmax.f32 %v718, 0.0
        %v785 = vmax.f32 %v720, 0.0
        %v786 = vpack.c.bf16 %v724, %v722
        %v787 = vpack.c.bf16 %v725, %v723
        %v788 = vpack.c.bf16 %v728, %v726
        %v789 = vpack.c.bf16 %v729, %v727
        %v790 = vpack.c.bf16 %v732, %v730
        %v791 = vpack.c.bf16 %v733, %v731
        %v792 = vpack.c.bf16 %v736, %v734
        %v793 = vpack.c.bf16 %v737, %v735
        %v794 = vpack.c.bf16 %v740, %v738
        %v795 = vpack.c.bf16 %v741, %v739
        %v796 = vpack.c.bf16 %v744, %v742
        %v797 = vpack.c.bf16 %v745, %v743
        %v798 = vpack.c.bf16 %v748, %v746
        %v799 = vpack.c.bf16 %v749, %v747
        %v800 = vpack.c.bf16 %v752, %v750
        %v801 = vpack.c.bf16 %v753, %v751
        %v802 = vpack.c.bf16 %v756, %v754
        %v803 = vpack.c.bf16 %v757, %v755
        %v804 = vpack.c.bf16 %v760, %v758
        %v805 = vpack.c.bf16 %v761, %v759
        %v806 = vpack.c.bf16 %v764, %v762
        %v807 = vpack.c.bf16 %v765, %v763
        %v808 = vpack.c.bf16 %v768, %v766
        %v809 = vpack.c.bf16 %v769, %v767
        %v810 = vpack.c.bf16 %v772, %v770
        %v811 = vpack.c.bf16 %v773, %v771
        %v812 = vpack.c.bf16 %v776, %v774
        %v813 = vpack.c.bf16 %v777, %v775
        %v814 = vpack.c.bf16 %v780, %v778
        %v815 = vpack.c.bf16 %v781, %v779
        %v816 = vpack.c.bf16 %v784, %v782
        %v817 = vpack.c.bf16 %v785, %v783
        %v818 = vld [vmem:[#allocation7] sm:$0xf]
        %v819 = vld [vmem:[#allocation7 + $0x4] sm:$0xf]
        %v820 = vld [vmem:[#allocation7 + $0x8] sm:$0xf]
        %v821 = vld [vmem:[#allocation7 + $0xc] sm:$0xf]
        %v822 = vld [vmem:[#allocation7 + $0x10] sm:$0xf]
        %v823 = vld [vmem:[#allocation7 + $0x14] sm:$0xf]
        %v824 = vld [vmem:[#allocation7 + $0x18] sm:$0xf]
        %v825 = vld [vmem:[#allocation7 + $0x1c] sm:$0xf]
        %v826 = vld [vmem:[#allocation7 + $0x20] sm:$0xf]
        %v827 = vld [vmem:[#allocation7 + $0x24] sm:$0xf]
        %v828 = vld [vmem:[#allocation7 + $0x28] sm:$0xf]
        %v829 = vld [vmem:[#allocation7 + $0x2c] sm:$0xf]
        %v830 = vld [vmem:[#allocation7 + $0x30] sm:$0xf]
        %v831 = vld [vmem:[#allocation7 + $0x34] sm:$0xf]
        %v832 = vld [vmem:[#allocation7 + $0x38] sm:$0xf]
        %v833 = vld [vmem:[#allocation7 + $0x3c] sm:$0xf]
        %v834 = vld [vmem:[#allocation7 + $0x40] sm:$0xf]
        %v835 = vld [vmem:[#allocation7 + $0x44] sm:$0xf]
        %v836 = vld [vmem:[#allocation7 + $0x48] sm:$0xf]
        %v837 = vld [vmem:[#allocation7 + $0x4c] sm:$0xf]
        %v838 = vld [vmem:[#allocation7 + $0x50] sm:$0xf]
        %v839 = vld [vmem:[#allocation7 + $0x54] sm:$0xf]
        %v840 = vld [vmem:[#allocation7 + $0x58] sm:$0xf]
        %v841 = vld [vmem:[#allocation7 + $0x5c] sm:$0xf]
        %v842 = vld [vmem:[#allocation7 + $0x60] sm:$0xf]
        %v843 = vld [vmem:[#allocation7 + $0x64] sm:$0xf]
        %v844 = vld [vmem:[#allocation7 + $0x68] sm:$0xf]
        %v845 = vld [vmem:[#allocation7 + $0x6c] sm:$0xf]
        %v846 = vld [vmem:[#allocation7 + $0x70] sm:$0xf]
        %v847 = vld [vmem:[#allocation7 + $0x74] sm:$0xf]
        %v848 = vld [vmem:[#allocation7 + $0x78] sm:$0xf]
        %v849 = vld [vmem:[#allocation7 + $0x7c] sm:$0xf]
        %v850 = vld [vmem:[%s4] sm:$0x1]
        %v852 = vlaneseq
        %v853 = vshrl.u32 %v852, 7
        %v854 = vsub.s32 0, %v853
        %v855 = vrot.slane %v850, %v854
        %v889 = vunpack.c.l.b16 %v818
        %v890 = vunpack.c.l.b16 %v819
        %v891 = vunpack.c.l.b16 %v820
        %v892 = vunpack.c.l.b16 %v821
        %v893 = vunpack.c.l.b16 %v822
        %v894 = vunpack.c.l.b16 %v823
        %v895 = vunpack.c.l.b16 %v824
        %v896 = vunpack.c.l.b16 %v825
        %v897 = vunpack.c.l.b16 %v826
        %v898 = vunpack.c.l.b16 %v827
        %v899 = vunpack.c.l.b16 %v828
        %v900 = vunpack.c.l.b16 %v829
        %v901 = vunpack.c.l.b16 %v830
        %v902 = vunpack.c.l.b16 %v831
        %v903 = vunpack.c.l.b16 %v832
        %v904 = vunpack.c.l.b16 %v833
        %v905 = vunpack.c.l.b16 %v834
        %v906 = vunpack.c.l.b16 %v835
        %v907 = vunpack.c.l.b16 %v836
        %v908 = vunpack.c.l.b16 %v837
        %v909 = vunpack.c.l.b16 %v838
        %v910 = vunpack.c.l.b16 %v839
        %v911 = vunpack.c.l.b16 %v840
        %v912 = vunpack.c.l.b16 %v841
        %v913 = vunpack.c.l.b16 %v842
        %v914 = vunpack.c.l.b16 %v843
        %v915 = vunpack.c.l.b16 %v844
        %v916 = vunpack.c.l.b16 %v845
        %v917 = vunpack.c.l.b16 %v846
        %v918 = vunpack.c.l.b16 %v847
        %v919 = vunpack.c.l.b16 %v848
        %v920 = vunpack.c.l.b16 %v849
        %v921 = vpack.c.b16 %v890, %v889
        %v922 = vpack.c.b16 %v892, %v891
        %v923 = vpack.c.b16 %v894, %v893
        %v924 = vpack.c.b16 %v896, %v895
        %v925 = vpack.c.b16 %v898, %v897
        %v926 = vpack.c.b16 %v900, %v899
        %v927 = vpack.c.b16 %v902, %v901
        %v928 = vpack.c.b16 %v904, %v903
        %v929 = vpack.c.b16 %v906, %v905
        %v930 = vpack.c.b16 %v908, %v907
        %v931 = vpack.c.b16 %v910, %v909
        %v932 = vpack.c.b16 %v912, %v911
        %v933 = vpack.c.b16 %v914, %v913
        %v934 = vpack.c.b16 %v916, %v915
        %v935 = vpack.c.b16 %v918, %v917
        %v936 = vpack.c.b16 %v920, %v919
        %953 = vmatprep.subr.bf16.mxu0 0
        %954 = vmatpush1.bf16.msra.mxu0 %v928
        %955 = vmatprep.subr.bf16.mxu0 0
        %956 = vmatpush1.bf16.msra.mxu0 %v927
        %957 = vmatprep.subr.bf16.mxu0 0
        %958 = vmatpush1.bf16.msra.mxu0 %v926
        %959 = vmatprep.subr.bf16.mxu0 0
        %960 = vmatpush1.bf16.msra.mxu0 %v925
        %961 = vmatprep.subr.bf16.mxu0 0
        %962 = vmatpush1.bf16.msra.mxu0 %v924
        %963 = vmatprep.subr.bf16.mxu0 0
        %964 = vmatpush1.bf16.msra.mxu0 %v923
        %965 = vmatprep.subr.bf16.mxu0 0
        %966 = vmatpush1.bf16.msra.mxu0 %v922
        %967 = vmatprep.subr.bf16.mxu0 0
        %968 = vmatpush1.bf16.msra.mxu0 %v921
        %969 = vmatprep.subr.bf16.mxu0 0
        %970 = vmatpush2.bf16.msra.mxu0 %v936
        %971 = vmatprep.subr.bf16.mxu0 0
        %972 = vmatpush2.bf16.msra.mxu0 %v935
        %973 = vmatprep.subr.bf16.mxu0 0
        %974 = vmatpush2.bf16.msra.mxu0 %v934
        %975 = vmatprep.subr.bf16.mxu0 0
        %976 = vmatpush2.bf16.msra.mxu0 %v933
        %977 = vmatprep.subr.bf16.mxu0 0
        %978 = vmatpush2.bf16.msra.mxu0 %v932
        %979 = vmatprep.subr.bf16.mxu0 0
        %980 = vmatpush2.bf16.msra.mxu0 %v931
        %981 = vmatprep.subr.bf16.mxu0 0
        %982 = vmatpush2.bf16.msra.mxu0 %v930
        %983 = vmatprep.subr.bf16.mxu0 0
        %984 = vmatpush2.bf16.msra.mxu0 %v929
        %985 = vmatprep.mubr.bf16.mxu0 %v787
        %986 = vmatmul.mubr.bf16.gmra.mxu0 %v786
        %v987 = vpop.f32.mrf.mxu0
        %v988 = vadd.f32 %v855, %v987
        %v989 = vpop.f32.mrf.mxu0
        %v990 = vpop.f32.mrf.mxu0
        %v991 = vadd.f32 %v855, %v990
        %v992 = vpop.f32.mrf.mxu0
        %993 = vmatprep.mubr.bf16.mxu0 %v789
        %994 = vmatmul.mubr.bf16.gmra.mxu0 %v788
        %v995 = vpop.f32.mrf.mxu0
        %v996 = vadd.f32 %v855, %v995
        %v997 = vpop.f32.mrf.mxu0
        %v998 = vpop.f32.mrf.mxu0
        %v999 = vadd.f32 %v855, %v998
        %v1000 = vpop.f32.mrf.mxu0
        %1001 = vmatprep.mubr.bf16.mxu0 %v791
        %1002 = vmatmul.mubr.bf16.gmra.mxu0 %v790
        %v1003 = vpop.f32.mrf.mxu0
        %v1004 = vadd.f32 %v855, %v1003
        %v1005 = vpop.f32.mrf.mxu0
        %v1006 = vpop.f32.mrf.mxu0
        %v1007 = vadd.f32 %v855, %v1006
        %v1008 = vpop.f32.mrf.mxu0
        %1009 = vmatprep.mubr.bf16.mxu0 %v793
        %1010 = vmatmul.mubr.bf16.gmra.mxu0 %v792
        %v1011 = vpop.f32.mrf.mxu0
        %v1012 = vadd.f32 %v855, %v1011
        %v1013 = vpop.f32.mrf.mxu0
        %v1014 = vpop.f32.mrf.mxu0
        %v1015 = vadd.f32 %v855, %v1014
        %v1016 = vpop.f32.mrf.mxu0
        %1017 = vmatprep.mubr.bf16.mxu0 %v795
        %1018 = vmatmul.mubr.bf16.gmra.mxu0 %v794
        %v1019 = vpop.f32.mrf.mxu0
        %v1020 = vadd.f32 %v855, %v1019
        %v1021 = vpop.f32.mrf.mxu0
        %v1022 = vpop.f32.mrf.mxu0
        %v1023 = vadd.f32 %v855, %v1022
        %v1024 = vpop.f32.mrf.mxu0
        %1025 = vmatprep.mubr.bf16.mxu0 %v797
        %1026 = vmatmul.mubr.bf16.gmra.mxu0 %v796
        %v1027 = vpop.f32.mrf.mxu0
        %v1028 = vadd.f32 %v855, %v1027
        %v1029 = vpop.f32.mrf.mxu0
        %v1030 = vpop.f32.mrf.mxu0
        %v1031 = vadd.f32 %v855, %v1030
        %v1032 = vpop.f32.mrf.mxu0
        %1033 = vmatprep.mubr.bf16.mxu0 %v799
        %1034 = vmatmul.mubr.bf16.gmra.mxu0 %v798
        %v1035 = vpop.f32.mrf.mxu0
        %v1036 = vadd.f32 %v855, %v1035
        %v1037 = vpop.f32.mrf.mxu0
        %v1038 = vpop.f32.mrf.mxu0
        %v1039 = vadd.f32 %v855, %v1038
        %v1040 = vpop.f32.mrf.mxu0
        %1041 = vmatprep.mubr.bf16.mxu0 %v801
        %1042 = vmatmul.mubr.bf16.gmra.mxu0 %v800
        %v1043 = vpop.f32.mrf.mxu0
        %v1044 = vadd.f32 %v855, %v1043
        %v1045 = vpop.f32.mrf.mxu0
        %v1046 = vpop.f32.mrf.mxu0
        %v1047 = vadd.f32 %v855, %v1046
        %v1048 = vpop.f32.mrf.mxu0
        %1049 = vmatprep.mubr.bf16.mxu0 %v803
        %1050 = vmatmul.mubr.bf16.gmra.mxu0 %v802
        %v1051 = vpop.f32.mrf.mxu0
        %v1052 = vadd.f32 %v855, %v1051
        %v1053 = vpop.f32.mrf.mxu0
        %v1054 = vpop.f32.mrf.mxu0
        %v1055 = vadd.f32 %v855, %v1054
        %v1056 = vpop.f32.mrf.mxu0
        %1057 = vmatprep.mubr.bf16.mxu0 %v805
        %1058 = vmatmul.mubr.bf16.gmra.mxu0 %v804
        %v1059 = vpop.f32.mrf.mxu0
        %v1060 = vadd.f32 %v855, %v1059
        %v1061 = vpop.f32.mrf.mxu0
        %v1062 = vpop.f32.mrf.mxu0
        %v1063 = vadd.f32 %v855, %v1062
        %v1064 = vpop.f32.mrf.mxu0
        %1065 = vmatprep.mubr.bf16.mxu0 %v807
        %1066 = vmatmul.mubr.bf16.gmra.mxu0 %v806
        %v1067 = vpop.f32.mrf.mxu0
        %v1068 = vadd.f32 %v855, %v1067
        %v1069 = vpop.f32.mrf.mxu0
        %v1070 = vpop.f32.mrf.mxu0
        %v1071 = vadd.f32 %v855, %v1070
        %v1072 = vpop.f32.mrf.mxu0
        %1073 = vmatprep.mubr.bf16.mxu0 %v809
        %1074 = vmatmul.mubr.bf16.gmra.mxu0 %v808
        %v1075 = vpop.f32.mrf.mxu0
        %v1076 = vadd.f32 %v855, %v1075
        %v1077 = vpop.f32.mrf.mxu0
        %v1078 = vpop.f32.mrf.mxu0
        %v1079 = vadd.f32 %v855, %v1078
        %v1080 = vpop.f32.mrf.mxu0
        %1081 = vmatprep.mubr.bf16.mxu0 %v811
        %1082 = vmatmul.mubr.bf16.gmra.mxu0 %v810
        %v1083 = vpop.f32.mrf.mxu0
        %v1084 = vadd.f32 %v855, %v1083
        %v1085 = vpop.f32.mrf.mxu0
        %v1086 = vpop.f32.mrf.mxu0
        %v1087 = vadd.f32 %v855, %v1086
        %v1088 = vpop.f32.mrf.mxu0
        %1089 = vmatprep.mubr.bf16.mxu0 %v813
        %1090 = vmatmul.mubr.bf16.gmra.mxu0 %v812
        %v1091 = vpop.f32.mrf.mxu0
        %v1092 = vadd.f32 %v855, %v1091
        %v1093 = vpop.f32.mrf.mxu0
        %v1094 = vpop.f32.mrf.mxu0
        %v1095 = vadd.f32 %v855, %v1094
        %v1096 = vpop.f32.mrf.mxu0
        %1097 = vmatprep.mubr.bf16.mxu0 %v815
        %1098 = vmatmul.mubr.bf16.gmra.mxu0 %v814
        %v1099 = vpop.f32.mrf.mxu0
        %v1100 = vadd.f32 %v855, %v1099
        %v1101 = vpop.f32.mrf.mxu0
        %v1102 = vpop.f32.mrf.mxu0
        %v1103 = vadd.f32 %v855, %v1102
        %v1104 = vpop.f32.mrf.mxu0
        %1105 = vmatprep.mubr.bf16.mxu0 %v817
        %1106 = vmatmul.mubr.bf16.gmra.mxu0 %v816
        %v1107 = vpop.f32.mrf.mxu0
        %v1108 = vadd.f32 %v855, %v1107
        %v1109 = vpop.f32.mrf.mxu0
        %v1110 = vpop.f32.mrf.mxu0
        %v1111 = vadd.f32 %v855, %v1110
        %v1112 = vpop.f32.mrf.mxu0
        %1113 = vdwg.mxu0
        %v1114 = vpack.c.bf16 %v991, %v988
        %v1115 = vpack.c.bf16 %v999, %v996
        %v1116 = vpack.c.bf16 %v1007, %v1004
        %v1117 = vpack.c.bf16 %v1015, %v1012
        %v1118 = vpack.c.bf16 %v1023, %v1020
        %v1119 = vpack.c.bf16 %v1031, %v1028
        %v1120 = vpack.c.bf16 %v1039, %v1036
        %v1121 = vpack.c.bf16 %v1047, %v1044
        %v1122 = vpack.c.bf16 %v1055, %v1052
        %v1123 = vpack.c.bf16 %v1063, %v1060
        %v1124 = vpack.c.bf16 %v1071, %v1068
        %v1125 = vpack.c.bf16 %v1079, %v1076
        %v1126 = vpack.c.bf16 %v1087, %v1084
        %v1127 = vpack.c.bf16 %v1095, %v1092
        %v1128 = vpack.c.bf16 %v1103, %v1100
        %v1129 = vpack.c.bf16 %v1111, %v1108
        %v1146 = vunpack.c.l.b16 %v1114
        %v1147 = vunpack.c.h.b16 %v1114
        %v1148 = vunpack.c.l.b16 %v1115
        %v1149 = vunpack.c.h.b16 %v1115
        %v1150 = vunpack.c.l.b16 %v1116
        %v1151 = vunpack.c.h.b16 %v1116
        %v1152 = vunpack.c.l.b16 %v1117
        %v1153 = vunpack.c.h.b16 %v1117
        %v1154 = vunpack.c.l.b16 %v1118
        %v1155 = vunpack.c.h.b16 %v1118
        %v1156 = vunpack.c.l.b16 %v1119
        %v1157 = vunpack.c.h.b16 %v1119
        %v1158 = vunpack.c.l.b16 %v1120
        %v1159 = vunpack.c.h.b16 %v1120
        %v1160 = vunpack.c.l.b16 %v1121
        %v1161 = vunpack.c.h.b16 %v1121
        %v1162 = vunpack.c.l.b16 %v1122
        %v1163 = vunpack.c.h.b16 %v1122
        %v1164 = vunpack.c.l.b16 %v1123
        %v1165 = vunpack.c.h.b16 %v1123
        %v1166 = vunpack.c.l.b16 %v1124
        %v1167 = vunpack.c.h.b16 %v1124
        %v1168 = vunpack.c.l.b16 %v1125
        %v1169 = vunpack.c.h.b16 %v1125
        %v1170 = vunpack.c.l.b16 %v1126
        %v1171 = vunpack.c.h.b16 %v1126
        %v1172 = vunpack.c.l.b16 %v1127
        %v1173 = vunpack.c.h.b16 %v1127
        %v1174 = vunpack.c.l.b16 %v1128
        %v1175 = vunpack.c.h.b16 %v1128
        %v1176 = vunpack.c.l.b16 %v1129
        %v1177 = vunpack.c.h.b16 %v1129
        %v1178 = vpack.c.b16 %v1146, %v1146
        %v1179 = vpack.c.b16 %v1147, %v1147
        %v1180 = vpack.c.b16 %v1148, %v1148
        %v1181 = vpack.c.b16 %v1149, %v1149
        %v1182 = vpack.c.b16 %v1150, %v1150
        %v1183 = vpack.c.b16 %v1151, %v1151
        %v1184 = vpack.c.b16 %v1152, %v1152
        %v1185 = vpack.c.b16 %v1153, %v1153
        %v1186 = vpack.c.b16 %v1154, %v1154
        %v1187 = vpack.c.b16 %v1155, %v1155
        %v1188 = vpack.c.b16 %v1156, %v1156
        %v1189 = vpack.c.b16 %v1157, %v1157
        %v1190 = vpack.c.b16 %v1158, %v1158
        %v1191 = vpack.c.b16 %v1159, %v1159
        %v1192 = vpack.c.b16 %v1160, %v1160
        %v1193 = vpack.c.b16 %v1161, %v1161
        %v1194 = vpack.c.b16 %v1162, %v1162
        %v1195 = vpack.c.b16 %v1163, %v1163
        %v1196 = vpack.c.b16 %v1164, %v1164
        %v1197 = vpack.c.b16 %v1165, %v1165
        %v1198 = vpack.c.b16 %v1166, %v1166
        %v1199 = vpack.c.b16 %v1167, %v1167
        %v1200 = vpack.c.b16 %v1168, %v1168
        %v1201 = vpack.c.b16 %v1169, %v1169
        %v1202 = vpack.c.b16 %v1170, %v1170
        %v1203 = vpack.c.b16 %v1171, %v1171
        %v1204 = vpack.c.b16 %v1172, %v1172
        %v1205 = vpack.c.b16 %v1173, %v1173
        %v1206 = vpack.c.b16 %v1174, %v1174
        %v1207 = vpack.c.b16 %v1175, %v1175
        %v1208 = vpack.c.b16 %v1176, %v1176
        %v1209 = vpack.c.b16 %v1177, %v1177
        %1242 = vst [vmem:[%s289] sm:$0xf] %v1178
        %1243 = vst [vmem:[%s289 + $0x4] sm:$0xf] %v1179
        %1244 = vst [vmem:[%s289 + $0x8] sm:$0xf] %v1180
        %1245 = vst [vmem:[%s289 + $0xc] sm:$0xf] %v1181
        %1246 = vst [vmem:[%s289 + $0x10] sm:$0xf] %v1182
        %1247 = vst [vmem:[%s289 + $0x14] sm:$0xf] %v1183
        %1248 = vst [vmem:[%s289 + $0x18] sm:$0xf] %v1184
        %1249 = vst [vmem:[%s289 + $0x1c] sm:$0xf] %v1185
        %1250 = vst [vmem:[%s289 + $0x20] sm:$0xf] %v1186
        %1251 = vst [vmem:[%s289 + $0x24] sm:$0xf] %v1187
        %1252 = vst [vmem:[%s289 + $0x28] sm:$0xf] %v1188
        %1253 = vst [vmem:[%s289 + $0x2c] sm:$0xf] %v1189
        %1254 = vst [vmem:[%s289 + $0x30] sm:$0xf] %v1190
        %1255 = vst [vmem:[%s289 + $0x34] sm:$0xf] %v1191
        %1256 = vst [vmem:[%s289 + $0x38] sm:$0xf] %v1192
        %1257 = vst [vmem:[%s289 + $0x3c] sm:$0xf] %v1193
        %1258 = vst [vmem:[%s289 + $0x40] sm:$0xf] %v1194
        %1259 = vst [vmem:[%s289 + $0x44] sm:$0xf] %v1195
        %1260 = vst [vmem:[%s289 + $0x48] sm:$0xf] %v1196
        %1261 = vst [vmem:[%s289 + $0x4c] sm:$0xf] %v1197
        %1262 = vst [vmem:[%s289 + $0x50] sm:$0xf] %v1198
        %1263 = vst [vmem:[%s289 + $0x54] sm:$0xf] %v1199
        %1264 = vst [vmem:[%s289 + $0x58] sm:$0xf] %v1200
        %1265 = vst [vmem:[%s289 + $0x5c] sm:$0xf] %v1201
        %1266 = vst [vmem:[%s289 + $0x60] sm:$0xf] %v1202
        %1267 = vst [vmem:[%s289 + $0x64] sm:$0xf] %v1203
        %1268 = vst [vmem:[%s289 + $0x68] sm:$0xf] %v1204
        %1269 = vst [vmem:[%s289 + $0x6c] sm:$0xf] %v1205
        %1270 = vst [vmem:[%s289 + $0x70] sm:$0xf] %v1206
        %1271 = vst [vmem:[%s289 + $0x74] sm:$0xf] %v1207
        %1272 = vst [vmem:[%s289 + $0x78] sm:$0xf] %v1208
        %1273 = vst [vmem:[%s289 + $0x7c] sm:$0xf] %v1209
        %s1274 = sand.u32 %s157, 1
        %s1275 = scalar_lea.sflag [#allocation4], %s1274
        %s1276 = sand.u32 %s157, 1
        %s1277 = smul.addr %s1276, 128
        %s1278 = scalar_lea.vmem [#allocation8], %s1277
        // Predicated region
        $region53: #{tpu_custom_call.1} parent=39 // pred_check
          %p1279 = pneg %p167
        $region54: #{tpu_custom_call.1} parent=39 // pred_check_branch
          %1281 = sbr.rel (%p1279) target = $region56
        $region55: #{tpu_custom_call.1} parent=39 // pred_region
          %s1282 = smul.u32 32, %s28
          %s1284 = ssub.s32 2048, 2048
          %1285 = vsyncadd %s1275, %s1284
          %s1286 = smul.addr %s27, 32
          %s1287 = sadd.s32 %s1282, %s1286
          %s1288 = smul.addr %s1287, 64
          %s1289 = scalar_lea.hbm %s5, %s1288
          %s1290 = sshll.u32 %s1278, 4
          %s1291 = int_to_ptr.vmem [resolvable:$true] %s1290
          %1296 = dma.vmem_to_hbm [thread:$0]  %s1291, 2048, %s1289, %s1275, 64, 64, 4
        $region56: #{tpu_custom_call.1} parent=39 // pred_fallthru
          _
      $region40: #{tpu_custom_call.1} parent=5 // pred_fallthru
        _
      %p1297 = scmp.le.s32.totalorder 2, %s18
      // Predicated region
      $region57: #{tpu_custom_call.1} parent=5 // pred_check
        %p1298 = pneg %p1297
      $region58: #{tpu_custom_call.1} parent=5 // pred_check_branch
        %1300 = sbr.rel (%p1298) target = $region60
      $region59: #{tpu_custom_call.1} parent=5 // pred_region
        %s1301 = ssub.s32 %s18, 2
        // Predicated region
        $region61: #{tpu_custom_call.1} parent=59 // pred_check
          %p1302 = pneg %p173
        $region62: #{tpu_custom_call.1} parent=59 // pred_check_branch
          %1304 = sbr.rel (%p1302) target = $region64
        $region63: #{tpu_custom_call.1} parent=59 // pred_region
          %s1305 = sand.u32 %s158, 1
          %s1306 = scalar_lea.sflag [#allocation4], %s1305
          %s1307 = sand.u32 %s158, 1
          %s1308 = smul.addr %s1307, 128
          %s1309 = scalar_lea.vmem [#allocation8], %s1308
          %1310 = dma.done %s1306, 2048
        $region64: #{tpu_custom_call.1} parent=59 // pred_fallthru
          _
      $region60: #{tpu_custom_call.1} parent=5 // pred_fallthru
        _
    $region6: #{tpu_custom_call.1} parent=1 // loop_footer
      %s22 = sadd.s32 1, %s18
    $region7: #{tpu_custom_call.1} parent=1 // loop_footer_branch
      %17 = sbr.rel target = $region3
    $region8: #{tpu_custom_call.1} parent=1 // loop_exit
      _
    %1311 = vsyncpa [#allocation3], 1
    %s1312 = scalar_lea.sflag [#allocation3], 1
    %1313 = vsyncpa %s1312, 1
    %1314 = vsyncpa [#allocation6], 1
    %1315 = vsyncpa [#allocation4], 1
    %s1316 = scalar_lea.sflag [#allocation4], 1
    %1317 = vsyncpa %s1316, 1

// kernel: tpu_custom_call.1
$region0: #{tpu_custom_call.1}
  #allocation0 [shape = 'u32[]', space=smem, size = 0x4, offset = 0x4, fixed_abs, tag = 'smem constant byte address 0x4 - core index']
  #allocation1 [shape = 'u32[144,128]{1,0:T(1,128)}', space=vmem, size = 0x12000, scoped, tag = 'internal scratch']
  %s0 = inlined_call_operand.hbm [shape: bf16[2,256,128], index: 0, kind: input, shape index: {}]
  %s1 = inlined_call_operand.hbm [shape: bf16[128,256], index: 1, kind: input, shape index: {}]
  %s2 = inlined_call_operand.vmem [shape: f32[1,256], index: 2, kind: input, shape index: {}]
  %s3 = inlined_call_operand.hbm [shape: bf16[256,128], index: 3, kind: input, shape index: {}]
  %s4 = inlined_call_operand.vmem [shape: f32[1,128], index: 4, kind: input, shape index: {}]
  %s5 = inlined_call_operand.hbm [shape: bf16[2,256,128], index: 5, kind: output, shape index: {}]
  %s6 = sld [smem:[#allocation0]]
  $region65: #{tpu_custom_call.1} parent=0
    _
  %s8 = ssub.s32 1, %s6
  %s9 = scalar_select 0, %s8, %s6
  $region1: #{tpu_custom_call.1} parent=0
    #allocation2 [shape = 'u8[131072]{0}', space=vmem, size = 0x20000, scoped, tag = 'input window, operand 0']
    #allocation3 [shape = 's32[2]{0}', space=sflag, size = 0x8, scoped, tag = 'scoped memory for tpu_custom_call.1']
    #allocation4 [shape = 's32[2]{0}', space=sflag, size = 0x8, scoped, tag = 'scoped memory for tpu_custom_call.1']
    #allocation5 [shape = 'u8[65536]{0}', space=vmem, size = 0x10000, scoped, tag = 'input window, operand 1, single buffered']
    #allocation6 [shape = 's32[1]{0}', space=sflag, size = 0x4, scoped, tag = 'scoped memory for tpu_custom_call.1']
    #allocation7 [shape = 'u8[65536]{0}', space=vmem, size = 0x10000, scoped, tag = 'input window, operand 3, single buffered']
    #allocation8 [shape = 'u8[131072]{0}', space=vmem, size = 0x20000, scoped, tag = 'output window, operand 0']
    %10 = vsyncpa [#allocation3], 0
    %s11 = scalar_lea.sflag [#allocation3], 1
    %12 = vsyncpa %s11, 0
    %13 = vsyncpa [#allocation6], 0
    %14 = vsyncpa [#allocation4], 0
    %s15 = scalar_lea.sflag [#allocation4], 1
    %16 = vsyncpa %s15, 0
    loop: start=0, step=1, limit=4
    $region2: #{tpu_custom_call.1} parent=1 // loop_pre_header
      _
    $region3: #{tpu_custom_call.1} parent=1 // loop_header
      %s18 = sphi 0, %s22
      %p19 = scmp.ge.s32.totalorder %s18, 4
      %s25 = sphi 0, %s37
      %s26 = sphi 0, %s33
      %s27 = sphi 0, %s25
      %s28 = sphi 0, %s26
      %s29 = sphi 0, %s27
      %s30 = sphi 0, %s28
      %s42 = sphi 0, %s44
      %s45 = sphi 0, %s42
      %s46 = sphi 0, %s45
      %s62 = sphi 0, %s46
      %s66 = sphi 0, %s66
      %s68 = sphi 0, %s66
      %s69 = sphi 0, %s68
      %s83 = sphi 0, %s69
      %s87 = sphi 0, %s87
      %s89 = sphi 0, %s87
      %s90 = sphi 0, %s89
      %s104 = sphi 0, %s90
      %s108 = sphi 0, %s108
      %s110 = sphi 0, %s108
      %s111 = sphi 0, %s110
      %s125 = sphi 0, %s111
      %s129 = sphi 0, %s129
      %s131 = sphi 0, %s129
      %s132 = sphi 0, %s131
      %s146 = sphi 0, %s132
      %s154 = sphi 0, %s156
      %s157 = sphi 0, %s154
      %s158 = sphi 0, %s157
      %s174 = sphi 0, %s158
    $region4: #{tpu_custom_call.1} parent=1 // loop_header_branch
      %21 = sbr.rel (%p19) target = $region8
    $region5: #{tpu_custom_call.1} parent=1 // loop_body
      %s23 = ssub.s32 %s18, 1
      %s24 = ssub.s32 %s18, 2
      %s31 = sadd.s32 1, %s26
      %p32 = scmp.ge.s32.totalorder %s31, 1
      %s33 = scalar_select %p32, 0, %s31
      %s34 = sadd.s32 1, %s25
      %s35 = scalar_select %p32, %s34, %s25
      %p36 = scmp.ge.s32.totalorder %s35, 2
      %s37 = scalar_select %p36, 0, %s35
      %s38 = ssub.s32 %s25, %s37
      %s39 = ssub.s32 %s26, %s33
      %s40 = sor.u32 %s38, %s39
      %p41 = scmp.eq.s32.totalorder %s40, 0
      %s43 = sadd.s32 %s42, 1
      %s44 = scalar_select %p41, %s42, %s43
      %p47 = pneg %p41
      %p48 = scmp.eq.s32.totalorder %s18, 1
      %p49 = por %p47, %p48
      %p50 = scmp.ne.s32.totalorder %s42, %s45
      %p51 = scmp.eq.s32.totalorder %s18, 0
      %p52 = por %p50, %p51
      %p53 = scmp.ne.s32.totalorder %s42, %s45
      %p54 = scmp.eq.s32.totalorder %s23, 1
      %p55 = por %p53, %p54
      %p56 = scmp.ne.s32.totalorder %s45, %s46
      %p57 = scmp.eq.s32.totalorder %s23, 0
      %p58 = por %p56, %p57
      %p59 = scmp.ne.s32.totalorder %s45, %s46
      %p60 = scmp.eq.s32.totalorder %s24, 1
      %p61 = por %p59, %p60
      %p63 = scmp.ne.s32.totalorder %s46, %s62
      %p64 = scmp.eq.s32.totalorder %s24, 0
      %p65 = por %p63, %p64
      %s67 = sadd.s32 %s66, 1
      %p70 = scmp.eq.s32.totalorder %s18, 1
      %p71 = scmp.ne.s32.totalorder %s66, %s68
      %p72 = scmp.eq.s32.totalorder %s18, 0
      %p73 = por %p71, %p72
      %p74 = scmp.ne.s32.totalorder %s66, %s68
      %p75 = scmp.eq.s32.totalorder %s23, 1
      %p76 = por %p74, %p75
      %p77 = scmp.ne.s32.totalorder %s68, %s69
      %p78 = scmp.eq.s32.totalorder %s23, 0
      %p79 = por %p77, %p78
      %p80 = scmp.ne.s32.totalorder %s68, %s69
      %p81 = scmp.eq.s32.totalorder %s24, 1
      %p82 = por %p80, %p81
      %p84 = scmp.ne.s32.totalorder %s69, %s83
      %p85 = scmp.eq.s32.totalorder %s24, 0
      %p86 = por %p84, %p85
      %s88 = sadd.s32 %s87, 1
      %p91 = scmp.eq.s32.totalorder %s18, 1
      %p92 = scmp.ne.s32.totalorder %s87, %s89
      %p93 = scmp.eq.s32.totalorder %s18, 0
      %p94 = por %p92, %p93
      %p95 = scmp.ne.s32.totalorder %s87, %s89
      %p96 = scmp.eq.s32.totalorder %s23, 1
      %p97 = por %p95, %p96
      %p98 = scmp.ne.s32.totalorder %s89, %s90
      %p99 = scmp.eq.s32.totalorder %s23, 0
      %p100 = por %p98, %p99
      %p101 = scmp.ne.s32.totalorder %s89, %s90
      %p102 = scmp.eq.s32.totalorder %s24, 1
      %p103 = por %p101, %p102
      %p105 = scmp.ne.s32.totalorder %s90, %s104
      %p106 = scmp.eq.s32.totalorder %s24, 0
      %p107 = por %p105, %p106
      %s109 = sadd.s32 %s108, 1
      %p112 = scmp.eq.s32.totalorder %s18, 1
      %p113 = scmp.ne.s32.totalorder %s108, %s110
      %p114 = scmp.eq.s32.totalorder %s18, 0
      %p115 = por %p113, %p114
      %p116 = scmp.ne.s32.totalorder %s108, %s110
      %p117 = scmp.eq.s32.totalorder %s23, 1
      %p118 = por %p116, %p117
      %p119 = scmp.ne.s32.totalorder %s110, %s111
      %p120 = scmp.eq.s32.totalorder %s23, 0
      %p121 = por %p119, %p120
      %p122 = scmp.ne.s32.totalorder %s110, %s111
      %p123 = scmp.eq.s32.totalorder %s24, 1
      %p124 = por %p122, %p123
      %p126 = scmp.ne.s32.totalorder %s111, %s125
      %p127 = scmp.eq.s32.totalorder %s24, 0
      %p128 = por %p126, %p127
      %s130 = sadd.s32 %s129, 1
      %p133 = scmp.eq.s32.totalorder %s18, 1
      %p134 = scmp.ne.s32.totalorder %s129, %s131
      %p135 = scmp.eq.s32.totalorder %s18, 0
      %p136 = por %p134, %p135
      %p137 = scmp.ne.s32.totalorder %s129, %s131
      %p138 = scmp.eq.s32.totalorder %s23, 1
      %p139 = por %p137, %p138
      %p140 = scmp.ne.s32.totalorder %s131, %s132
      %p141 = scmp.eq.s32.totalorder %s23, 0
      %p142 = por %p140, %p141
      %p143 = scmp.ne.s32.totalorder %s131, %s132
      %p144 = scmp.eq.s32.totalorder %s24, 1
      %p145 = por %p143, %p144
      %p147 = scmp.ne.s32.totalorder %s132, %s146
      %p148 = scmp.eq.s32.totalorder %s24, 0
      %p149 = por %p147, %p148
      %s150 = ssub.s32 %s25, %s37
      %s151 = ssub.s32 %s26, %s33
      %s152 = sor.u32 %s150, %s151
      %p153 = scmp.eq.s32.totalorder %s152, 0
      %s155 = sadd.s32 %s154, 1
      %s156 = scalar_select %p153, %s154, %s155
      %p159 = pneg %p153
      %p160 = scmp.eq.s32.totalorder %s18, 1
      %p161 = por %p159, %p160
      %p162 = scmp.ne.s32.totalorder %s154, %s157
      %p163 = scmp.eq.s32.totalorder %s18, 0
      %p164 = por %p162, %p163
      %p165 = scmp.ne.s32.totalorder %s154, %s157
      %p166 = scmp.eq.s32.totalorder %s23, 1
      %p167 = por %p165, %p166
      %p168 = scmp.ne.s32.totalorder %s157, %s158
      %p169 = scmp.eq.s32.totalorder %s23, 0
      %p170 = por %p168, %p169
      %p171 = scmp.ne.s32.totalorder %s157, %s158
      %p172 = scmp.eq.s32.totalorder %s24, 1
      %p173 = por %p171, %p172
      %p175 = scmp.ne.s32.totalorder %s158, %s174
      %p176 = scmp.eq.s32.totalorder %s24, 0
      %p177 = por %p175, %p176
      %p178 = scmp.le.s32.totalorder 1, %s18
      %p179 = scmp.lt.s32.totalorder %s18, 3
      %p180 = pnand %p178, %p179
      %p181 = pneg %p180
      // Predicated region
      $region9: #{tpu_custom_call.1} parent=5 // pred_check
        _
      $region10: #{tpu_custom_call.1} parent=5 // pred_check_branch
        %183 = sbr.rel (%p180) target = $region12
      $region11: #{tpu_custom_call.1} parent=5 // pred_region
        %s184 = ssub.s32 %s18, 1
        // Predicated region
        $region13: #{tpu_custom_call.1} parent=11 // pred_check
          %p185 = pneg %p79
        $region14: #{tpu_custom_call.1} parent=11 // pred_check_branch
          %187 = sbr.rel (%p185) target = $region16
        $region15: #{tpu_custom_call.1} parent=11 // pred_region
          %s189 = ssub.s32 2048, 2048
          %190 = vsyncadd [#allocation6], %s189
          %s191 = sshll.u32 [#allocation5], 4
          %s192 = int_to_ptr.vmem [resolvable:$true] %s191
          %197 = dma.hbm_to_vmem [thread:$0]  %s1, 2048, %s192, [#allocation6], 128, 128, 8
        $region16: #{tpu_custom_call.1} parent=11 // pred_fallthru
          _
        // Predicated region
        $region17: #{tpu_custom_call.1} parent=11 // pred_check
          %p198 = pneg %p100
        $region18: #{tpu_custom_call.1} parent=11 // pred_check_branch
          %200 = sbr.rel (%p198) target = $region20
        $region19: #{tpu_custom_call.1} parent=11 // pred_region
          _
        $region20: #{tpu_custom_call.1} parent=11 // pred_fallthru
          _
        // Predicated region
        $region21: #{tpu_custom_call.1} parent=11 // pred_check
          %p201 = pneg %p121
        $region22: #{tpu_custom_call.1} parent=11 // pred_check_branch
          %203 = sbr.rel (%p201) target = $region24
        $region23: #{tpu_custom_call.1} parent=11 // pred_region
          %s205 = ssub.s32 2048, 2048
          %206 = vsyncadd [#allocation6], %s205
          %s207 = sshll.u32 [#allocation7], 4
          %s208 = int_to_ptr.vmem [resolvable:$true] %s207
          %213 = dma.hbm_to_vmem [thread:$0]  %s3, 2048, %s208, [#allocation6], 64, 64, 4
        $region24: #{tpu_custom_call.1} parent=11 // pred_fallthru
          _
        // Predicated region
        $region25: #{tpu_custom_call.1} parent=11 // pred_check
          %p214 = pneg %p142
        $region26: #{tpu_custom_call.1} parent=11 // pred_check_branch
          %216 = sbr.rel (%p214) target = $region28
        $region27: #{tpu_custom_call.1} parent=11 // pred_region
          _
        $region28: #{tpu_custom_call.1} parent=11 // pred_fallthru
          _
      $region12: #{tpu_custom_call.1} parent=5 // pred_fallthru
        _
      %p217 = scmp.lt.s32.totalorder %s18, 2
      // Predicated region
      $region29: #{tpu_custom_call.1} parent=5 // pred_check
        %p218 = pneg %p217
      $region30: #{tpu_custom_call.1} parent=5 // pred_check_branch
        %220 = sbr.rel (%p218) target = $region32
      $region31: #{tpu_custom_call.1} parent=5 // pred_region
        // Predicated region
        $region33: #{tpu_custom_call.1} parent=31 // pred_check
          %p221 = pneg %p52
        $region34: #{tpu_custom_call.1} parent=31 // pred_check_branch
          %223 = sbr.rel (%p221) target = $region36
        $region35: #{tpu_custom_call.1} parent=31 // pred_region
          %s224 = sand.u32 %s42, 1
          %s225 = scalar_lea.sflag [#allocation3], %s224
          %s226 = sand.u32 %s42, 1
          %s227 = smul.addr %s226, 128
          %s228 = scalar_lea.vmem [#allocation2], %s227
          %s229 = smul.u32 32, %s26
          %s231 = ssub.s32 2048, 2048
          %232 = vsyncadd %s225, %s231
          %s233 = smul.addr %s25, 32
          %s234 = sadd.s32 %s229, %s233
          %s235 = smul.addr %s234, 64
          %s236 = scalar_lea.hbm %s0, %s235
          %s237 = sshll.u32 %s228, 4
          %s238 = int_to_ptr.vmem [resolvable:$true] %s237
          %243 = dma.hbm_to_vmem [thread:$0]  %s236, 2048, %s238, %s225, 64, 64, 4
        $region36: #{tpu_custom_call.1} parent=31 // pred_fallthru
          _
      $region32: #{tpu_custom_call.1} parent=5 // pred_fallthru
        _
      %p244 = scmp.le.s32.totalorder 1, %s18
      %p245 = scmp.lt.s32.totalorder %s18, 3
      %p246 = pnand %p244, %p245
      %p247 = pneg %p246
      // Predicated region
      $region37: #{tpu_custom_call.1} parent=5 // pred_check
        _
      $region38: #{tpu_custom_call.1} parent=5 // pred_check_branch
        %249 = sbr.rel (%p246) target = $region40
      $region39: #{tpu_custom_call.1} parent=5 // pred_region
        %s250 = ssub.s32 %s18, 1
        %s251 = sand.u32 %s45, 1
        %s252 = scalar_lea.sflag [#allocation3], %s251
        %s253 = sand.u32 %s45, 1
        %s254 = smul.addr %s253, 128
        %s255 = scalar_lea.vmem [#allocation2], %s254
        // Predicated region
        $region41: #{tpu_custom_call.1} parent=39 // pred_check
          %p256 = pneg %p58
        $region42: #{tpu_custom_call.1} parent=39 // pred_check_branch
          %258 = sbr.rel (%p256) target = $region44
        $region43: #{tpu_custom_call.1} parent=39 // pred_region
          %259 = dma.done %s252, 2048
        $region44: #{tpu_custom_call.1} parent=39 // pred_fallthru
          _
        // Predicated region
        $region45: #{tpu_custom_call.1} parent=39 // pred_check
          %p260 = pneg %p79
        $region46: #{tpu_custom_call.1} parent=39 // pred_check_branch
          %262 = sbr.rel (%p260) target = $region48
        $region47: #{tpu_custom_call.1} parent=39 // pred_region
          %263 = dma.done [#allocation6], 2048
        $region48: #{tpu_custom_call.1} parent=39 // pred_fallthru
          _
        // Predicated region
        $region49: #{tpu_custom_call.1} parent=39 // pred_check
          %p264 = pneg %p121
        $region50: #{tpu_custom_call.1} parent=39 // pred_check_branch
          %266 = sbr.rel (%p264) target = $region52
        $region51: #{tpu_custom_call.1} parent=39 // pred_region
          %267 = dma.done [#allocation6], 2048
        $region52: #{tpu_custom_call.1} parent=39 // pred_fallthru
          _
        %s268 = sand.u32 %s45, 1
        %s269 = scalar_lea.sflag [#allocation3], %s268
        %s270 = sand.u32 %s45, 1
        %s271 = smul.addr %s270, 128
        %s272 = scalar_lea.vmem [#allocation2], %s271
        %p273 = pneg %p58
        %p274 = pneg %p55
        %p275 = pneg %p79
        %p276 = pneg %p76
        %p277 = pneg %p100
        %p278 = pneg %p97
        %p279 = pneg %p121
        %p280 = pneg %p118
        %p281 = pneg %p142
        %p282 = pneg %p139
        %p283 = pneg %p170
        %p284 = pneg %p167
        %s285 = sand.u32 %s157, 1
        %s286 = scalar_lea.sflag [#allocation4], %s285
        %s287 = sand.u32 %s157, 1
        %s288 = smul.addr %s287, 128
        %s289 = scalar_lea.vmem [#allocation8], %s288
        %s290 = smul.u32 32, %s28
        %s291 = smul.u32 32, %s28
        %v293 = vld [vmem:[%s255] sm:$0xf]
        %v294 = vld [vmem:[%s255 + $0x4] sm:$0xf]
        %v295 = vld [vmem:[%s255 + $0x8] sm:$0xf]
        %v296 = vld [vmem:[%s255 + $0xc] sm:$0xf]
        %v297 = vld [vmem:[%s255 + $0x10] sm:$0xf]
        %v298 = vld [vmem:[%s255 + $0x14] sm:$0xf]
        %v299 = vld [vmem:[%s255 + $0x18] sm:$0xf]
        %v300 = vld [vmem:[%s255 + $0x1c] sm:$0xf]
        %v301 = vld [vmem:[%s255 + $0x20] sm:$0xf]
        %v302 = vld [vmem:[%s255 + $0x24] sm:$0xf]
        %v303 = vld [vmem:[%s255 + $0x28] sm:$0xf]
        %v304 = vld [vmem:[%s255 + $0x2c] sm:$0xf]
        %v305 = vld [vmem:[%s255 + $0x30] sm:$0xf]
        %v306 = vld [vmem:[%s255 + $0x34] sm:$0xf]
        %v307 = vld [vmem:[%s255 + $0x38] sm:$0xf]
        %v308 = vld [vmem:[%s255 + $0x3c] sm:$0xf]
        %v309 = vld [vmem:[%s255 + $0x40] sm:$0xf]
        %v310 = vld [vmem:[%s255 + $0x44] sm:$0xf]
        %v311 = vld [vmem:[%s255 + $0x48] sm:$0xf]
        %v312 = vld [vmem:[%s255 + $0x4c] sm:$0xf]
        %v313 = vld [vmem:[%s255 + $0x50] sm:$0xf]
        %v314 = vld [vmem:[%s255 + $0x54] sm:$0xf]
        %v315 = vld [vmem:[%s255 + $0x58] sm:$0xf]
        %v316 = vld [vmem:[%s255 + $0x5c] sm:$0xf]
        %v317 = vld [vmem:[%s255 + $0x60] sm:$0xf]
        %v318 = vld [vmem:[%s255 + $0x64] sm:$0xf]
        %v319 = vld [vmem:[%s255 + $0x68] sm:$0xf]
        %v320 = vld [vmem:[%s255 + $0x6c] sm:$0xf]
        %v321 = vld [vmem:[%s255 + $0x70] sm:$0xf]
        %v322 = vld [vmem:[%s255 + $0x74] sm:$0xf]
        %v323 = vld [vmem:[%s255 + $0x78] sm:$0xf]
        %v324 = vld [vmem:[%s255 + $0x7c] sm:$0xf]
        %v325 = vld [vmem:[#allocation5] sm:$0xff]
        %v326 = vld [vmem:[#allocation5 + $0x8] sm:$0xff]
        %v327 = vld [vmem:[#allocation5 + $0x10] sm:$0xff]
        %v328 = vld [vmem:[#allocation5 + $0x18] sm:$0xff]
        %v329 = vld [vmem:[#allocation5 + $0x20] sm:$0xff]
        %v330 = vld [vmem:[#allocation5 + $0x28] sm:$0xff]
        %v331 = vld [vmem:[#allocation5 + $0x30] sm:$0xff]
        %v332 = vld [vmem:[#allocation5 + $0x38] sm:$0xff]
        %v333 = vld [vmem:[#allocation5 + $0x40] sm:$0xff]
        %v334 = vld [vmem:[#allocation5 + $0x48] sm:$0xff]
        %v335 = vld [vmem:[#allocation5 + $0x50] sm:$0xff]
        %v336 = vld [vmem:[#allocation5 + $0x58] sm:$0xff]
        %v337 = vld [vmem:[#allocation5 + $0x60] sm:$0xff]
        %v338 = vld [vmem:[#allocation5 + $0x68] sm:$0xff]
        %v339 = vld [vmem:[#allocation5 + $0x70] sm:$0xff]
        %v340 = vld [vmem:[#allocation5 + $0x78] sm:$0xff]
        %v341 = vld [vmem:[%s2] sm:$0x3]
        %v343 = vlaneseq
        %v344 = vshrl.u32 %v343, 7
        %v345 = vsub.s32 0, %v344
        %v346 = vrot.slane %v341, %v345
        %v347 = vlaneseq
        %v348 = vshrl.u32 %v347, 7
        %v349 = vsub.s32 1, %v348
        %v350 = vrot.slane %v341, %v349
        %v385 = vunpack.c.l.b16 %v293
        %v386 = vunpack.c.l.b16 %v294
        %v387 = vunpack.c.l.b16 %v295
        %v388 = vunpack.c.l.b16 %v296
        %v389 = vunpack.c.l.b16 %v297
        %v390 = vunpack.c.l.b16 %v298
        %v391 = vunpack.c.l.b16 %v299
        %v392 = vunpack.c.l.b16 %v300
        %v393 = vunpack.c.l.b16 %v301
        %v394 = vunpack.c.l.b16 %v302
        %v395 = vunpack.c.l.b16 %v303
        %v396 = vunpack.c.l.b16 %v304
        %v397 = vunpack.c.l.b16 %v305
        %v398 = vunpack.c.l.b16 %v306
        %v399 = vunpack.c.l.b16 %v307
        %v400 = vunpack.c.l.b16 %v308
        %v401 = vunpack.c.l.b16 %v309
        %v402 = vunpack.c.l.b16 %v310
        %v403 = vunpack.c.l.b16 %v311
        %v404 = vunpack.c.l.b16 %v312
        %v405 = vunpack.c.l.b16 %v313
        %v406 = vunpack.c.l.b16 %v314
        %v407 = vunpack.c.l.b16 %v315
        %v408 = vunpack.c.l.b16 %v316
        %v409 = vunpack.c.l.b16 %v317
        %v410 = vunpack.c.l.b16 %v318
        %v411 = vunpack.c.l.b16 %v319
        %v412 = vunpack.c.l.b16 %v320
        %v413 = vunpack.c.l.b16 %v321
        %v414 = vunpack.c.l.b16 %v322
        %v415 = vunpack.c.l.b16 %v323
        %v416 = vunpack.c.l.b16 %v324
        %v417 = vpack.c.b16 %v386, %v385
        %v418 = vpack.c.b16 %v388, %v387
        %v419 = vpack.c.b16 %v390, %v389
        %v420 = vpack.c.b16 %v392, %v391
        %v421 = vpack.c.b16 %v394, %v393
        %v422 = vpack.c.b16 %v396, %v395
        %v423 = vpack.c.b16 %v398, %v397
        %v424 = vpack.c.b16 %v400, %v399
        %v425 = vpack.c.b16 %v402, %v401
        %v426 = vpack.c.b16 %v404, %v403
        %v427 = vpack.c.b16 %v406, %v405
        %v428 = vpack.c.b16 %v408, %v407
        %v429 = vpack.c.b16 %v410, %v409
        %v430 = vpack.c.b16 %v412, %v411
        %v431 = vpack.c.b16 %v414, %v413
        %v432 = vpack.c.b16 %v416, %v415
        %v465 = vunpack.c.l.b16 %v325
        %v466 = vunpack.c.h.b16 %v325
        %v467 = vunpack.c.l.b16 %v326
        %v468 = vunpack.c.h.b16 %v326
        %v469 = vunpack.c.l.b16 %v327
        %v470 = vunpack.c.h.b16 %v327
        %v471 = vunpack.c.l.b16 %v328
        %v472 = vunpack.c.h.b16 %v328
        %v473 = vunpack.c.l.b16 %v329
        %v474 = vunpack.c.h.b16 %v329
        %v475 = vunpack.c.l.b16 %v330
        %v476 = vunpack.c.h.b16 %v330
        %v477 = vunpack.c.l.b16 %v331
        %v478 = vunpack.c.h.b16 %v331
        %v479 = vunpack.c.l.b16 %v332
        %v480 = vunpack.c.h.b16 %v332
        %v481 = vunpack.c.l.b16 %v333
        %v482 = vunpack.c.h.b16 %v333
        %v483 = vunpack.c.l.b16 %v334
        %v484 = vunpack.c.h.b16 %v334
        %v485 = vunpack.c.l.b16 %v335
        %v486 = vunpack.c.h.b16 %v335
        %v487 = vunpack.c.l.b16 %v336
        %v488 = vunpack.c.h.b16 %v336
        %v489 = vunpack.c.l.b16 %v337
        %v490 = vunpack.c.h.b16 %v337
        %v491 = vunpack.c.l.b16 %v338
        %v492 = vunpack.c.h.b16 %v338
        %v493 = vunpack.c.l.b16 %v339
        %v494 = vunpack.c.h.b16 %v339
        %v495 = vunpack.c.l.b16 %v340
        %v496 = vunpack.c.h.b16 %v340
        %v497 = vpack.c.b16 %v467, %v465
        %v498 = vpack.c.b16 %v468, %v466
        %v499 = vpack.c.b16 %v471, %v469
        %v500 = vpack.c.b16 %v472, %v470
        %v501 = vpack.c.b16 %v475, %v473
        %v502 = vpack.c.b16 %v476, %v474
        %v503 = vpack.c.b16 %v479, %v477
        %v504 = vpack.c.b16 %v480, %v478
        %v505 = vpack.c.b16 %v483, %v481
        %v506 = vpack.c.b16 %v484, %v482
        %v507 = vpack.c.b16 %v487, %v485
        %v508 = vpack.c.b16 %v488, %v486
        %v509 = vpack.c.b16 %v491, %v489
        %v510 = vpack.c.b16 %v492, %v490
        %v511 = vpack.c.b16 %v495, %v493
        %v512 = vpack.c.b16 %v496, %v494
        %529 = vmatprep.subr.bf16.mxu0 %v512
        %530 = vmatpush1.bf16.msra.mxu0 %v511
        %531 = vmatprep.subr.bf16.mxu0 %v510
        %532 = vmatpush1.bf16.msra.mxu0 %v509
        %533 = vmatprep.subr.bf16.mxu0 %v508
        %534 = vmatpush1.bf16.msra.mxu0 %v507
        %535 = vmatprep.subr.bf16.mxu0 %v506
        %536 = vmatpush1.bf16.msra.mxu0 %v505
        %537 = vmatprep.subr.bf16.mxu0 %v504
        %538 = vmatpush1.bf16.msra.mxu0 %v503
        %539 = vmatprep.subr.bf16.mxu0 %v502
        %540 = vmatpush1.bf16.msra.mxu0 %v501
        %541 = vmatprep.subr.bf16.mxu0 %v500
        %542 = vmatpush1.bf16.msra.mxu0 %v499
        %543 = vmatprep.subr.bf16.mxu0 %v498
        %544 = vmatpush1.bf16.msra.mxu0 %v497
        %545 = vmatprep.subr.bf16.mxu0 0
        %546 = vmatpush2.bf16.msra.mxu0 0
        %547 = vmatprep.subr.bf16.mxu0 0
        %548 = vmatpush2.bf16.msra.mxu0 0
        %549 = vmatprep.subr.bf16.mxu0 0
        %550 = vmatpush2.bf16.msra.mxu0 0
        %551 = vmatprep.subr.bf16.mxu0 0
        %552 = vmatpush2.bf16.msra.mxu0 0
        %553 = vmatprep.subr.bf16.mxu0 0
        %554 = vmatpush2.bf16.msra.mxu0 0
        %555 = vmatprep.subr.bf16.mxu0 0
        %556 = vmatpush2.bf16.msra.mxu0 0
        %557 = vmatprep.subr.bf16.mxu0 0
        %558 = vmatpush2.bf16.msra.mxu0 0
        %559 = vmatprep.subr.bf16.mxu0 0
        %560 = vmatpush2.bf16.msra.mxu0 0
        %561 = vmatprep.mubr.bf16.mxu0 0
        %562 = vmatmul.mubr.bf16.gmra.mxu0 %v417
        %v563 = vpop.f32.mrf.mxu0
        %v564 = vadd.f32 %v346, %v563
        %v565 = vpop.f32.mrf.mxu0
        %v566 = vadd.f32 %v350, %v565
        %v567 = vpop.f32.mrf.mxu0
        %v568 = vadd.f32 %v346, %v567
        %v569 = vpop.f32.mrf.mxu0
        %v570 = vadd.f32 %v350, %v569
        %571 = vmatprep.mubr.bf16.mxu0 0
        %572 = vmatmul.mubr.bf16.gmra.mxu0 %v418
        %v573 = vpop.f32.mrf.mxu0
        %v574 = vadd.f32 %v346, %v573
        %v575 = vpop.f32.mrf.mxu0
        %v576 = vadd.f32 %v350, %v575
        %v577 = vpop.f32.mrf.mxu0
        %v578 = vadd.f32 %v346, %v577
        %v579 = vpop.f32.mrf.mxu0
        %v580 = vadd.f32 %v350, %v579
        %581 = vmatprep.mubr.bf16.mxu0 0
        %582 = vmatmul.mubr.bf16.gmra.mxu0 %v419
        %v583 = vpop.f32.mrf.mxu0
        %v584 = vadd.f32 %v346, %v583
        %v585 = vpop.f32.mrf.mxu0
        %v586 = vadd.f32 %v350, %v585
        %v587 = vpop.f32.mrf.mxu0
        %v588 = vadd.f32 %v346, %v587
        %v589 = vpop.f32.mrf.mxu0
        %v590 = vadd.f32 %v350, %v589
        %591 = vmatprep.mubr.bf16.mxu0 0
        %592 = vmatmul.mubr.bf16.gmra.mxu0 %v420
        %v593 = vpop.f32.mrf.mxu0
        %v594 = vadd.f32 %v346, %v593
        %v595 = vpop.f32.mrf.mxu0
        %v596 = vadd.f32 %v350, %v595
        %v597 = vpop.f32.mrf.mxu0
        %v598 = vadd.f32 %v346, %v597
        %v599 = vpop.f32.mrf.mxu0
        %v600 = vadd.f32 %v350, %v599
        %601 = vmatprep.mubr.bf16.mxu0 0
        %602 = vmatmul.mubr.bf16.gmra.mxu0 %v421
        %v603 = vpop.f32.mrf.mxu0
        %v604 = vadd.f32 %v346, %v603
        %v605 = vpop.f32.mrf.mxu0
        %v606 = vadd.f32 %v350, %v605
        %v607 = vpop.f32.mrf.mxu0
        %v608 = vadd.f32 %v346, %v607
        %v609 = vpop.f32.mrf.mxu0
        %v610 = vadd.f32 %v350, %v609
        %611 = vmatprep.mubr.bf16.mxu0 0
        %612 = vmatmul.mubr.bf16.gmra.mxu0 %v422
        %v613 = vpop.f32.mrf.mxu0
        %v614 = vadd.f32 %v346, %v613
        %v615 = vpop.f32.mrf.mxu0
        %v616 = vadd.f32 %v350, %v615
        %v617 = vpop.f32.mrf.mxu0
        %v618 = vadd.f32 %v346, %v617
        %v619 = vpop.f32.mrf.mxu0
        %v620 = vadd.f32 %v350, %v619
        %621 = vmatprep.mubr.bf16.mxu0 0
        %622 = vmatmul.mubr.bf16.gmra.mxu0 %v423
        %v623 = vpop.f32.mrf.mxu0
        %v624 = vadd.f32 %v346, %v623
        %v625 = vpop.f32.mrf.mxu0
        %v626 = vadd.f32 %v350, %v625
        %v627 = vpop.f32.mrf.mxu0
        %v628 = vadd.f32 %v346, %v627
        %v629 = vpop.f32.mrf.mxu0
        %v630 = vadd.f32 %v350, %v629
        %631 = vmatprep.mubr.bf16.mxu0 0
        %632 = vmatmul.mubr.bf16.gmra.mxu0 %v424
        %v633 = vpop.f32.mrf.mxu0
        %v634 = vadd.f32 %v346, %v633
        %v635 = vpop.f32.mrf.mxu0
        %v636 = vadd.f32 %v350, %v635
        %v637 = vpop.f32.mrf.mxu0
        %v638 = vadd.f32 %v346, %v637
        %v639 = vpop.f32.mrf.mxu0
        %v640 = vadd.f32 %v350, %v639
        %641 = vmatprep.mubr.bf16.mxu0 0
        %642 = vmatmul.mubr.bf16.gmra.mxu0 %v425
        %v643 = vpop.f32.mrf.mxu0
        %v644 = vadd.f32 %v346, %v643
        %v645 = vpop.f32.mrf.mxu0
        %v646 = vadd.f32 %v350, %v645
        %v647 = vpop.f32.mrf.mxu0
        %v648 = vadd.f32 %v346, %v647
        %v649 = vpop.f32.mrf.mxu0
        %v650 = vadd.f32 %v350, %v649
        %651 = vmatprep.mubr.bf16.mxu0 0
        %652 = vmatmul.mubr.bf16.gmra.mxu0 %v426
        %v653 = vpop.f32.mrf.mxu0
        %v654 = vadd.f32 %v346, %v653
        %v655 = vpop.f32.mrf.mxu0
        %v656 = vadd.f32 %v350, %v655
        %v657 = vpop.f32.mrf.mxu0
        %v658 = vadd.f32 %v346, %v657
        %v659 = vpop.f32.mrf.mxu0
        %v660 = vadd.f32 %v350, %v659
        %661 = vmatprep.mubr.bf16.mxu0 0
        %662 = vmatmul.mubr.bf16.gmra.mxu0 %v427
        %v663 = vpop.f32.mrf.mxu0
        %v664 = vadd.f32 %v346, %v663
        %v665 = vpop.f32.mrf.mxu0
        %v666 = vadd.f32 %v350, %v665
        %v667 = vpop.f32.mrf.mxu0
        %v668 = vadd.f32 %v346, %v667
        %v669 = vpop.f32.mrf.mxu0
        %v670 = vadd.f32 %v350, %v669
        %671 = vmatprep.mubr.bf16.mxu0 0
        %672 = vmatmul.mubr.bf16.gmra.mxu0 %v428
        %v673 = vpop.f32.mrf.mxu0
        %v674 = vadd.f32 %v346, %v673
        %v675 = vpop.f32.mrf.mxu0
        %v676 = vadd.f32 %v350, %v675
        %v677 = vpop.f32.mrf.mxu0
        %v678 = vadd.f32 %v346, %v677
        %v679 = vpop.f32.mrf.mxu0
        %v680 = vadd.f32 %v350, %v679
        %681 = vmatprep.mubr.bf16.mxu0 0
        %682 = vmatmul.mubr.bf16.gmra.mxu0 %v429
        %v683 = vpop.f32.mrf.mxu0
        %v684 = vadd.f32 %v346, %v683
        %v685 = vpop.f32.mrf.mxu0
        %v686 = vadd.f32 %v350, %v685
        %v687 = vpop.f32.mrf.mxu0
        %v688 = vadd.f32 %v346, %v687
        %v689 = vpop.f32.mrf.mxu0
        %v690 = vadd.f32 %v350, %v689
        %691 = vmatprep.mubr.bf16.mxu0 0
        %692 = vmatmul.mubr.bf16.gmra.mxu0 %v430
        %v693 = vpop.f32.mrf.mxu0
        %v694 = vadd.f32 %v346, %v693
        %v695 = vpop.f32.mrf.mxu0
        %v696 = vadd.f32 %v350, %v695
        %v697 = vpop.f32.mrf.mxu0
        %v698 = vadd.f32 %v346, %v697
        %v699 = vpop.f32.mrf.mxu0
        %v700 = vadd.f32 %v350, %v699
        %701 = vmatprep.mubr.bf16.mxu0 0
        %702 = vmatmul.mubr.bf16.gmra.mxu0 %v431
        %v703 = vpop.f32.mrf.mxu0
        %v704 = vadd.f32 %v346, %v703
        %v705 = vpop.f32.mrf.mxu0
        %v706 = vadd.f32 %v350, %v705
        %v707 = vpop.f32.mrf.mxu0
        %v708 = vadd.f32 %v346, %v707
        %v709 = vpop.f32.mrf.mxu0
        %v710 = vadd.f32 %v350, %v709
        %711 = vmatprep.mubr.bf16.mxu0 0
        %712 = vmatmul.mubr.bf16.gmra.mxu0 %v432
        %v713 = vpop.f32.mrf.mxu0
        %v714 = vadd.f32 %v346, %v713
        %v715 = vpop.f32.mrf.mxu0
        %v716 = vadd.f32 %v350, %v715
        %v717 = vpop.f32.mrf.mxu0
        %v718 = vadd.f32 %v346, %v717
        %v719 = vpop.f32.mrf.mxu0
        %v720 = vadd.f32 %v350, %v719
        %721 = vdwg.mxu0
        %v722 = vmax.f32 %v564, 0.0
        %v723 = vmax.f32 %v566, 0.0
        %v724 = vmax.f32 %v568, 0.0
        %v725 = vmax.f32 %v570, 0.0
        %v726 = vmax.f32 %v574, 0.0
        %v727 = vmax.f32 %v576, 0.0
        %v728 = vmax.f32 %v578, 0.0
        %v729 = vmax.f32 %v580, 0.0
        %v730 = vmax.f32 %v584, 0.0
        %v731 = vmax.f32 %v586, 0.0
        %v732 = vmax.f32 %v588, 0.0
        %v733 = vmax.f32 %v590, 0.0
        %v734 = vmax.f32 %v594, 0.0
        %v735 = vmax.f32 %v596, 0.0
        %v736 = vmax.f32 %v598, 0.0
        %v737 = vmax.f32 %v600, 0.0
        %v738 = vmax.f32 %v604, 0.0
        %v739 = vmax.f32 %v606, 0.0
        %v740 = vmax.f32 %v608, 0.0
        %v741 = vmax.f32 %v610, 0.0
        %v742 = vmax.f32 %v614, 0.0
        %v743 = vmax.f32 %v616, 0.0
        %v744 = vmax.f32 %v618, 0.0
        %v745 = vmax.f32 %v620, 0.0
        %v746 = vmax.f32 %v624, 0.0
        %v747 = vmax.f32 %v626, 0.0
        %v748 = vmax.f32 %v628, 0.0
        %v749 = vmax.f32 %v630, 0.0
        %v750 = vmax.f32 %v634, 0.0
        %v751 = vmax.f32 %v636, 0.0
        %v752 = vmax.f32 %v638, 0.0
        %v753 = vmax.f32 %v640, 0.0
        %v754 = vmax.f32 %v644, 0.0
        %v755 = vmax.f32 %v646, 0.0
        %v756 = vmax.f32 %v648, 0.0
        %v757 = vmax.f32 %v650, 0.0
        %v758 = vmax.f32 %v654, 0.0
        %v759 = vmax.f32 %v656, 0.0
        %v760 = vmax.f32 %v658, 0.0
        %v761 = vmax.f32 %v660, 0.0
        %v762 = vmax.f32 %v664, 0.0
        %v763 = vmax.f32 %v666, 0.0
        %v764 = vmax.f32 %v668, 0.0
        %v765 = vmax.f32 %v670, 0.0
        %v766 = vmax.f32 %v674, 0.0
        %v767 = vmax.f32 %v676, 0.0
        %v768 = vmax.f32 %v678, 0.0
        %v769 = vmax.f32 %v680, 0.0
        %v770 = vmax.f32 %v684, 0.0
        %v771 = vmax.f32 %v686, 0.0
        %v772 = vmax.f32 %v688, 0.0
        %v773 = vmax.f32 %v690, 0.0
        %v774 = vmax.f32 %v694, 0.0
        %v775 = vmax.f32 %v696, 0.0
        %v776 = vmax.f32 %v698, 0.0
        %v777 = vmax.f32 %v700, 0.0
        %v778 = vmax.f32 %v704, 0.0
        %v779 = vmax.f32 %v706, 0.0
        %v780 = vmax.f32 %v708, 0.0
        %v781 = vmax.f32 %v710, 0.0
        %v782 = vmax.f32 %v714, 0.0
        %v783 = vmax.f32 %v716, 0.0
        %v784 = vmax.f32 %v718, 0.0
        %v785 = vmax.f32 %v720, 0.0
        %v786 = vpack.c.bf16 %v724, %v722
        %v787 = vpack.c.bf16 %v725, %v723
        %v788 = vpack.c.bf16 %v728, %v726
        %v789 = vpack.c.bf16 %v729, %v727
        %v790 = vpack.c.bf16 %v732, %v730
        %v791 = vpack.c.bf16 %v733, %v731
        %v792 = vpack.c.bf16 %v736, %v734
        %v793 = vpack.c.bf16 %v737, %v735
        %v794 = vpack.c.bf16 %v740, %v738
        %v795 = vpack.c.bf16 %v741, %v739
        %v796 = vpack.c.bf16 %v744, %v742
        %v797 = vpack.c.bf16 %v745, %v743
        %v798 = vpack.c.bf16 %v748, %v746
        %v799 = vpack.c.bf16 %v749, %v747
        %v800 = vpack.c.bf16 %v752, %v750
        %v801 = vpack.c.bf16 %v753, %v751
        %v802 = vpack.c.bf16 %v756, %v754
        %v803 = vpack.c.bf16 %v757, %v755
        %v804 = vpack.c.bf16 %v760, %v758
        %v805 = vpack.c.bf16 %v761, %v759
        %v806 = vpack.c.bf16 %v764, %v762
        %v807 = vpack.c.bf16 %v765, %v763
        %v808 = vpack.c.bf16 %v768, %v766
        %v809 = vpack.c.bf16 %v769, %v767
        %v810 = vpack.c.bf16 %v772, %v770
        %v811 = vpack.c.bf16 %v773, %v771
        %v812 = vpack.c.bf16 %v776, %v774
        %v813 = vpack.c.bf16 %v777, %v775
        %v814 = vpack.c.bf16 %v780, %v778
        %v815 = vpack.c.bf16 %v781, %v779
        %v816 = vpack.c.bf16 %v784, %v782
        %v817 = vpack.c.bf16 %v785, %v783
        %v818 = vld [vmem:[#allocation7] sm:$0xf]
        %v819 = vld [vmem:[#allocation7 + $0x4] sm:$0xf]
        %v820 = vld [vmem:[#allocation7 + $0x8] sm:$0xf]
        %v821 = vld [vmem:[#allocation7 + $0xc] sm:$0xf]
        %v822 = vld [vmem:[#allocation7 + $0x10] sm:$0xf]
        %v823 = vld [vmem:[#allocation7 + $0x14] sm:$0xf]
        %v824 = vld [vmem:[#allocation7 + $0x18] sm:$0xf]
        %v825 = vld [vmem:[#allocation7 + $0x1c] sm:$0xf]
        %v826 = vld [vmem:[#allocation7 + $0x20] sm:$0xf]
        %v827 = vld [vmem:[#allocation7 + $0x24] sm:$0xf]
        %v828 = vld [vmem:[#allocation7 + $0x28] sm:$0xf]
        %v829 = vld [vmem:[#allocation7 + $0x2c] sm:$0xf]
        %v830 = vld [vmem:[#allocation7 + $0x30] sm:$0xf]
        %v831 = vld [vmem:[#allocation7 + $0x34] sm:$0xf]
        %v832 = vld [vmem:[#allocation7 + $0x38] sm:$0xf]
        %v833 = vld [vmem:[#allocation7 + $0x3c] sm:$0xf]
        %v834 = vld [vmem:[#allocation7 + $0x40] sm:$0xf]
        %v835 = vld [vmem:[#allocation7 + $0x44] sm:$0xf]
        %v836 = vld [vmem:[#allocation7 + $0x48] sm:$0xf]
        %v837 = vld [vmem:[#allocation7 + $0x4c] sm:$0xf]
        %v838 = vld [vmem:[#allocation7 + $0x50] sm:$0xf]
        %v839 = vld [vmem:[#allocation7 + $0x54] sm:$0xf]
        %v840 = vld [vmem:[#allocation7 + $0x58] sm:$0xf]
        %v841 = vld [vmem:[#allocation7 + $0x5c] sm:$0xf]
        %v842 = vld [vmem:[#allocation7 + $0x60] sm:$0xf]
        %v843 = vld [vmem:[#allocation7 + $0x64] sm:$0xf]
        %v844 = vld [vmem:[#allocation7 + $0x68] sm:$0xf]
        %v845 = vld [vmem:[#allocation7 + $0x6c] sm:$0xf]
        %v846 = vld [vmem:[#allocation7 + $0x70] sm:$0xf]
        %v847 = vld [vmem:[#allocation7 + $0x74] sm:$0xf]
        %v848 = vld [vmem:[#allocation7 + $0x78] sm:$0xf]
        %v849 = vld [vmem:[#allocation7 + $0x7c] sm:$0xf]
        %v850 = vld [vmem:[%s4] sm:$0x1]
        %v852 = vlaneseq
        %v853 = vshrl.u32 %v852, 7
        %v854 = vsub.s32 0, %v853
        %v855 = vrot.slane %v850, %v854
        %v889 = vunpack.c.l.b16 %v818
        %v890 = vunpack.c.l.b16 %v819
        %v891 = vunpack.c.l.b16 %v820
        %v892 = vunpack.c.l.b16 %v821
        %v893 = vunpack.c.l.b16 %v822
        %v894 = vunpack.c.l.b16 %v823
        %v895 = vunpack.c.l.b16 %v824
        %v896 = vunpack.c.l.b16 %v825
        %v897 = vunpack.c.l.b16 %v826
        %v898 = vunpack.c.l.b16 %v827
        %v899 = vunpack.c.l.b16 %v828
        %v900 = vunpack.c.l.b16 %v829
        %v901 = vunpack.c.l.b16 %v830
        %v902 = vunpack.c.l.b16 %v831
        %v903 = vunpack.c.l.b16 %v832
        %v904 = vunpack.c.l.b16 %v833
        %v905 = vunpack.c.l.b16 %v834
        %v906 = vunpack.c.l.b16 %v835
        %v907 = vunpack.c.l.b16 %v836
        %v908 = vunpack.c.l.b16 %v837
        %v909 = vunpack.c.l.b16 %v838
        %v910 = vunpack.c.l.b16 %v839
        %v911 = vunpack.c.l.b16 %v840
        %v912 = vunpack.c.l.b16 %v841
        %v913 = vunpack.c.l.b16 %v842
        %v914 = vunpack.c.l.b16 %v843
        %v915 = vunpack.c.l.b16 %v844
        %v916 = vunpack.c.l.b16 %v845
        %v917 = vunpack.c.l.b16 %v846
        %v918 = vunpack.c.l.b16 %v847
        %v919 = vunpack.c.l.b16 %v848
        %v920 = vunpack.c.l.b16 %v849
        %v921 = vpack.c.b16 %v890, %v889
        %v922 = vpack.c.b16 %v892, %v891
        %v923 = vpack.c.b16 %v894, %v893
        %v924 = vpack.c.b16 %v896, %v895
        %v925 = vpack.c.b16 %v898, %v897
        %v926 = vpack.c.b16 %v900, %v899
        %v927 = vpack.c.b16 %v902, %v901
        %v928 = vpack.c.b16 %v904, %v903
        %v929 = vpack.c.b16 %v906, %v905
        %v930 = vpack.c.b16 %v908, %v907
        %v931 = vpack.c.b16 %v910, %v909
        %v932 = vpack.c.b16 %v912, %v911
        %v933 = vpack.c.b16 %v914, %v913
        %v934 = vpack.c.b16 %v916, %v915
        %v935 = vpack.c.b16 %v918, %v917
        %v936 = vpack.c.b16 %v920, %v919
        %953 = vmatprep.subr.bf16.mxu0 0
        %954 = vmatpush1.bf16.msra.mxu0 %v928
        %955 = vmatprep.subr.bf16.mxu0 0
        %956 = vmatpush1.bf16.msra.mxu0 %v927
        %957 = vmatprep.subr.bf16.mxu0 0
        %958 = vmatpush1.bf16.msra.mxu0 %v926
        %959 = vmatprep.subr.bf16.mxu0 0
        %960 = vmatpush1.bf16.msra.mxu0 %v925
        %961 = vmatprep.subr.bf16.mxu0 0
        %962 = vmatpush1.bf16.msra.mxu0 %v924
        %963 = vmatprep.subr.bf16.mxu0 0
        %964 = vmatpush1.bf16.msra.mxu0 %v923
        %965 = vmatprep.subr.bf16.mxu0 0
        %966 = vmatpush1.bf16.msra.mxu0 %v922
        %967 = vmatprep.subr.bf16.mxu0 0
        %968 = vmatpush1.bf16.msra.mxu0 %v921
        %969 = vmatprep.subr.bf16.mxu0 0
        %970 = vmatpush2.bf16.msra.mxu0 %v936
        %971 = vmatprep.subr.bf16.mxu0 0
        %972 = vmatpush2.bf16.msra.mxu0 %v935
        %973 = vmatprep.subr.bf16.mxu0 0
        %974 = vmatpush2.bf16.msra.mxu0 %v934
        %975 = vmatprep.subr.bf16.mxu0 0
        %976 = vmatpush2.bf16.msra.mxu0 %v933
        %977 = vmatprep.subr.bf16.mxu0 0
        %978 = vmatpush2.bf16.msra.mxu0 %v932
        %979 = vmatprep.subr.bf16.mxu0 0
        %980 = vmatpush2.bf16.msra.mxu0 %v931
        %981 = vmatprep.subr.bf16.mxu0 0
        %982 = vmatpush2.bf16.msra.mxu0 %v930
        %983 = vmatprep.subr.bf16.mxu0 0
        %984 = vmatpush2.bf16.msra.mxu0 %v929
        %985 = vmatprep.mubr.bf16.mxu0 %v787
        %986 = vmatmul.mubr.bf16.gmra.mxu0 %v786
        %v987 = vpop.f32.mrf.mxu0
        %v988 = vadd.f32 %v855, %v987
        %v989 = vpop.f32.mrf.mxu0
        %v990 = vpop.f32.mrf.mxu0
        %v991 = vadd.f32 %v855, %v990
        %v992 = vpop.f32.mrf.mxu0
        %993 = vmatprep.mubr.bf16.mxu0 %v789
        %994 = vmatmul.mubr.bf16.gmra.mxu0 %v788
        %v995 = vpop.f32.mrf.mxu0
        %v996 = vadd.f32 %v855, %v995
        %v997 = vpop.f32.mrf.mxu0
        %v998 = vpop.f32.mrf.mxu0
        %v999 = vadd.f32 %v855, %v998
        %v1000 = vpop.f32.mrf.mxu0
        %1001 = vmatprep.mubr.bf16.mxu0 %v791
        %1002 = vmatmul.mubr.bf16.gmra.mxu0 %v790
        %v1003 = vpop.f32.mrf.mxu0
        %v1004 = vadd.f32 %v855, %v1003
        %v1005 = vpop.f32.mrf.mxu0
        %v1006 = vpop.f32.mrf.mxu0
        %v1007 = vadd.f32 %v855, %v1006
        %v1008 = vpop.f32.mrf.mxu0
        %1009 = vmatprep.mubr.bf16.mxu0 %v793
        %1010 = vmatmul.mubr.bf16.gmra.mxu0 %v792
        %v1011 = vpop.f32.mrf.mxu0
        %v1012 = vadd.f32 %v855, %v1011
        %v1013 = vpop.f32.mrf.mxu0
        %v1014 = vpop.f32.mrf.mxu0
        %v1015 = vadd.f32 %v855, %v1014
        %v1016 = vpop.f32.mrf.mxu0
        %1017 = vmatprep.mubr.bf16.mxu0 %v795
        %1018 = vmatmul.mubr.bf16.gmra.mxu0 %v794
        %v1019 = vpop.f32.mrf.mxu0
        %v1020 = vadd.f32 %v855, %v1019
        %v1021 = vpop.f32.mrf.mxu0
        %v1022 = vpop.f32.mrf.mxu0
        %v1023 = vadd.f32 %v855, %v1022
        %v1024 = vpop.f32.mrf.mxu0
        %1025 = vmatprep.mubr.bf16.mxu0 %v797
        %1026 = vmatmul.mubr.bf16.gmra.mxu0 %v796
        %v1027 = vpop.f32.mrf.mxu0
        %v1028 = vadd.f32 %v855, %v1027
        %v1029 = vpop.f32.mrf.mxu0
        %v1030 = vpop.f32.mrf.mxu0
        %v1031 = vadd.f32 %v855, %v1030
        %v1032 = vpop.f32.mrf.mxu0
        %1033 = vmatprep.mubr.bf16.mxu0 %v799
        %1034 = vmatmul.mubr.bf16.gmra.mxu0 %v798
        %v1035 = vpop.f32.mrf.mxu0
        %v1036 = vadd.f32 %v855, %v1035
        %v1037 = vpop.f32.mrf.mxu0
        %v1038 = vpop.f32.mrf.mxu0
        %v1039 = vadd.f32 %v855, %v1038
        %v1040 = vpop.f32.mrf.mxu0
        %1041 = vmatprep.mubr.bf16.mxu0 %v801
        %1042 = vmatmul.mubr.bf16.gmra.mxu0 %v800
        %v1043 = vpop.f32.mrf.mxu0
        %v1044 = vadd.f32 %v855, %v1043
        %v1045 = vpop.f32.mrf.mxu0
        %v1046 = vpop.f32.mrf.mxu0
        %v1047 = vadd.f32 %v855, %v1046
        %v1048 = vpop.f32.mrf.mxu0
        %1049 = vmatprep.mubr.bf16.mxu0 %v803
        %1050 = vmatmul.mubr.bf16.gmra.mxu0 %v802
        %v1051 = vpop.f32.mrf.mxu0
        %v1052 = vadd.f32 %v855, %v1051
        %v1053 = vpop.f32.mrf.mxu0
        %v1054 = vpop.f32.mrf.mxu0
        %v1055 = vadd.f32 %v855, %v1054
        %v1056 = vpop.f32.mrf.mxu0
        %1057 = vmatprep.mubr.bf16.mxu0 %v805
        %1058 = vmatmul.mubr.bf16.gmra.mxu0 %v804
        %v1059 = vpop.f32.mrf.mxu0
        %v1060 = vadd.f32 %v855, %v1059
        %v1061 = vpop.f32.mrf.mxu0
        %v1062 = vpop.f32.mrf.mxu0
        %v1063 = vadd.f32 %v855, %v1062
        %v1064 = vpop.f32.mrf.mxu0
        %1065 = vmatprep.mubr.bf16.mxu0 %v807
        %1066 = vmatmul.mubr.bf16.gmra.mxu0 %v806
        %v1067 = vpop.f32.mrf.mxu0
        %v1068 = vadd.f32 %v855, %v1067
        %v1069 = vpop.f32.mrf.mxu0
        %v1070 = vpop.f32.mrf.mxu0
        %v1071 = vadd.f32 %v855, %v1070
        %v1072 = vpop.f32.mrf.mxu0
        %1073 = vmatprep.mubr.bf16.mxu0 %v809
        %1074 = vmatmul.mubr.bf16.gmra.mxu0 %v808
        %v1075 = vpop.f32.mrf.mxu0
        %v1076 = vadd.f32 %v855, %v1075
        %v1077 = vpop.f32.mrf.mxu0
        %v1078 = vpop.f32.mrf.mxu0
        %v1079 = vadd.f32 %v855, %v1078
        %v1080 = vpop.f32.mrf.mxu0
        %1081 = vmatprep.mubr.bf16.mxu0 %v811
        %1082 = vmatmul.mubr.bf16.gmra.mxu0 %v810
        %v1083 = vpop.f32.mrf.mxu0
        %v1084 = vadd.f32 %v855, %v1083
        %v1085 = vpop.f32.mrf.mxu0
        %v1086 = vpop.f32.mrf.mxu0
        %v1087 = vadd.f32 %v855, %v1086
        %v1088 = vpop.f32.mrf.mxu0
        %1089 = vmatprep.mubr.bf16.mxu0 %v813
        %1090 = vmatmul.mubr.bf16.gmra.mxu0 %v812
        %v1091 = vpop.f32.mrf.mxu0
        %v1092 = vadd.f32 %v855, %v1091
        %v1093 = vpop.f32.mrf.mxu0
        %v1094 = vpop.f32.mrf.mxu0
        %v1095 = vadd.f32 %v855, %v1094
        %v1096 = vpop.f32.mrf.mxu0
        %1097 = vmatprep.mubr.bf16.mxu0 %v815
        %1098 = vmatmul.mubr.bf16.gmra.mxu0 %v814
        %v1099 = vpop.f32.mrf.mxu0
        %v1100 = vadd.f32 %v855, %v1099
        %v1101 = vpop.f32.mrf.mxu0
        %v1102 = vpop.f32.mrf.mxu0
        %v1103 = vadd.f32 %v855, %v1102
        %v1104 = vpop.f32.mrf.mxu0
        %1105 = vmatprep.mubr.bf16.mxu0 %v817
        %1106 = vmatmul.mubr.bf16.gmra.mxu0 %v816
        %v1107 = vpop.f32.mrf.mxu0
        %v1108 = vadd.f32 %v855, %v1107
        %v1109 = vpop.f32.mrf.mxu0
        %v1110 = vpop.f32.mrf.mxu0
        %v1111 = vadd.f32 %v855, %v1110
        %v1112 = vpop.f32.mrf.mxu0
        %1113 = vdwg.mxu0
        %v1114 = vpack.c.bf16 %v991, %v988
        %v1115 = vpack.c.bf16 %v999, %v996
        %v1116 = vpack.c.bf16 %v1007, %v1004
        %v1117 = vpack.c.bf16 %v1015, %v1012
        %v1118 = vpack.c.bf16 %v1023, %v1020
        %v1119 = vpack.c.bf16 %v1031, %v1028
        %v1120 = vpack.c.bf16 %v1039, %v1036
        %v1121 = vpack.c.bf16 %v1047, %v1044
        %v1122 = vpack.c.bf16 %v1055, %v1052
        %v1123 = vpack.c.bf16 %v1063, %v1060
        %v1124 = vpack.c.bf16 %v1071, %v1068
        %v1125 = vpack.c.bf16 %v1079, %v1076
        %v1126 = vpack.c.bf16 %v1087, %v1084
        %v1127 = vpack.c.bf16 %v1095, %v1092
        %v1128 = vpack.c.bf16 %v1103, %v1100
        %v1129 = vpack.c.bf16 %v1111, %v1108
        %v1146 = vunpack.c.l.b16 %v1114
        %v1147 = vunpack.c.h.b16 %v1114
        %v1148 = vunpack.c.l.b16 %v1115
        %v1149 = vunpack.c.h.b16 %v1115
        %v1150 = vunpack.c.l.b16 %v1116
        %v1151 = vunpack.c.h.b16 %v1116
        %v1152 = vunpack.c.l.b16 %v1117
        %v1153 = vunpack.c.h.b16 %v1117
        %v1154 = vunpack.c.l.b16 %v1118
        %v1155 = vunpack.c.h.b16 %v1118
        %v1156 = vunpack.c.l.b16 %v1119
        %v1157 = vunpack.c.h.b16 %v1119
        %v1158 = vunpack.c.l.b16 %v1120
        %v1159 = vunpack.c.h.b16 %v1120
        %v1160 = vunpack.c.l.b16 %v1121
        %v1161 = vunpack.c.h.b16 %v1121
        %v1162 = vunpack.c.l.b16 %v1122
        %v1163 = vunpack.c.h.b16 %v1122
        %v1164 = vunpack.c.l.b16 %v1123
        %v1165 = vunpack.c.h.b16 %v1123
        %v1166 = vunpack.c.l.b16 %v1124
        %v1167 = vunpack.c.h.b16 %v1124
        %v1168 = vunpack.c.l.b16 %v1125
        %v1169 = vunpack.c.h.b16 %v1125
        %v1170 = vunpack.c.l.b16 %v1126
        %v1171 = vunpack.c.h.b16 %v1126
        %v1172 = vunpack.c.l.b16 %v1127
        %v1173 = vunpack.c.h.b16 %v1127
        %v1174 = vunpack.c.l.b16 %v1128
        %v1175 = vunpack.c.h.b16 %v1128
        %v1176 = vunpack.c.l.b16 %v1129
        %v1177 = vunpack.c.h.b16 %v1129
        %v1178 = vpack.c.b16 %v1146, %v1146
        %v1179 = vpack.c.b16 %v1147, %v1147
        %v1180 = vpack.c.b16 %v1148, %v1148
        %v1181 = vpack.c.b16 %v1149, %v1149
        %v1182 = vpack.c.b16 %v1150, %v1150
        %v1183 = vpack.c.b16 %v1151, %v1151
        %v1184 = vpack.c.b16 %v1152, %v1152
        %v1185 = vpack.c.b16 %v1153, %v1153
        %v1186 = vpack.c.b16 %v1154, %v1154
        %v1187 = vpack.c.b16 %v1155, %v1155
        %v1188 = vpack.c.b16 %v1156, %v1156
        %v1189 = vpack.c.b16 %v1157, %v1157
        %v1190 = vpack.c.b16 %v1158, %v1158
        %v1191 = vpack.c.b16 %v1159, %v1159
        %v1192 = vpack.c.b16 %v1160, %v1160
        %v1193 = vpack.c.b16 %v1161, %v1161
        %v1194 = vpack.c.b16 %v1162, %v1162
        %v1195 = vpack.c.b16 %v1163, %v1163
        %v1196 = vpack.c.b16 %v1164, %v1164
        %v1197 = vpack.c.b16 %v1165, %v1165
        %v1198 = vpack.c.b16 %v1166, %v1166
        %v1199 = vpack.c.b16 %v1167, %v1167
        %v1200 = vpack.c.b16 %v1168, %v1168
        %v1201 = vpack.c.b16 %v1169, %v1169
        %v1202 = vpack.c.b16 %v1170, %v1170
        %v1203 = vpack.c.b16 %v1171, %v1171
        %v1204 = vpack.c.b16 %v1172, %v1172
        %v1205 = vpack.c.b16 %v1173, %v1173
        %v1206 = vpack.c.b16 %v1174, %v1174
        %v1207 = vpack.c.b16 %v1175, %v1175
        %v1208 = vpack.c.b16 %v1176, %v1176
        %v1209 = vpack.c.b16 %v1177, %v1177
        %1242 = vst [vmem:[%s289] sm:$0xf] %v1178
        %1243 = vst [vmem:[%s289 + $0x4] sm:$0xf] %v1179
        %1244 = vst [vmem:[%s289 + $0x8] sm:$0xf] %v1180
        %1245 = vst [vmem:[%s289 + $0xc] sm:$0xf] %v1181
        %1246 = vst [vmem:[%s289 + $0x10] sm:$0xf] %v1182
        %1247 = vst [vmem:[%s289 + $0x14] sm:$0xf] %v1183
        %1248 = vst [vmem:[%s289 + $0x18] sm:$0xf] %v1184
        %1249 = vst [vmem:[%s289 + $0x1c] sm:$0xf] %v1185
        %1250 = vst [vmem:[%s289 + $0x20] sm:$0xf] %v1186
        %1251 = vst [vmem:[%s289 + $0x24] sm:$0xf] %v1187
        %1252 = vst [vmem:[%s289 + $0x28] sm:$0xf] %v1188
        %1253 = vst [vmem:[%s289 + $0x2c] sm:$0xf] %v1189
        %1254 = vst [vmem:[%s289 + $0x30] sm:$0xf] %v1190
        %1255 = vst [vmem:[%s289 + $0x34] sm:$0xf] %v1191
        %1256 = vst [vmem:[%s289 + $0x38] sm:$0xf] %v1192
        %1257 = vst [vmem:[%s289 + $0x3c] sm:$0xf] %v1193
        %1258 = vst [vmem:[%s289 + $0x40] sm:$0xf] %v1194
        %1259 = vst [vmem:[%s289 + $0x44] sm:$0xf] %v1195
        %1260 = vst [vmem:[%s289 + $0x48] sm:$0xf] %v1196
        %1261 = vst [vmem:[%s289 + $0x4c] sm:$0xf] %v1197
        %1262 = vst [vmem:[%s289 + $0x50] sm:$0xf] %v1198
        %1263 = vst [vmem:[%s289 + $0x54] sm:$0xf] %v1199
        %1264 = vst [vmem:[%s289 + $0x58] sm:$0xf] %v1200
        %1265 = vst [vmem:[%s289 + $0x5c] sm:$0xf] %v1201
        %1266 = vst [vmem:[%s289 + $0x60] sm:$0xf] %v1202
        %1267 = vst [vmem:[%s289 + $0x64] sm:$0xf] %v1203
        %1268 = vst [vmem:[%s289 + $0x68] sm:$0xf] %v1204
        %1269 = vst [vmem:[%s289 + $0x6c] sm:$0xf] %v1205
        %1270 = vst [vmem:[%s289 + $0x70] sm:$0xf] %v1206
        %1271 = vst [vmem:[%s289 + $0x74] sm:$0xf] %v1207
        %1272 = vst [vmem:[%s289 + $0x78] sm:$0xf] %v1208
        %1273 = vst [vmem:[%s289 + $0x7c] sm:$0xf] %v1209
        %s1274 = sand.u32 %s157, 1
        %s1275 = scalar_lea.sflag [#allocation4], %s1274
        %s1276 = sand.u32 %s157, 1
        %s1277 = smul.addr %s1276, 128
        %s1278 = scalar_lea.vmem [#allocation8], %s1277
        // Predicated region
        $region53: #{tpu_custom_call.1} parent=39 // pred_check
          %p1279 = pneg %p167
        $region54: #{tpu_custom_call.1} parent=39 // pred_check_branch
          %1281 = sbr.rel (%p1279) target = $region56
        $region55: #{tpu_custom_call.1} parent=39 // pred_region
          %s1282 = smul.u32 32, %s28
          %s1284 = ssub.s32 2048, 2048
          %1285 = vsyncadd %s1275, %s1284
          %s1286 = smul.addr %s27, 32
          %s1287 = sadd.s32 %s1282, %s1286
          %s1288 = smul.addr %s1287, 64
          %s1289 = scalar_lea.hbm %s5, %s1288
          %s1290 = sshll.u32 %s1278, 4
          %s1291 = int_to_ptr.vmem [resolvable:$true] %s1290
          %1296 = dma.vmem_to_hbm [thread:$0]  %s1291, 2048, %s1289, %s1275, 64, 64, 4
        $region56: #{tpu_custom_call.1} parent=39 // pred_fallthru
          _
      $region40: #{tpu_custom_call.1} parent=5 // pred_fallthru
        _
      %p1297 = scmp.le.s32.totalorder 2, %s18
      // Predicated region
      $region57: #{tpu_custom_call.1} parent=5 // pred_check
        %p1298 = pneg %p1297
      $region58: #{tpu_custom_call.1} parent=5 // pred_check_branch
        %1300 = sbr.rel (%p1298) target = $region60
      $region59: #{tpu_custom_call.1} parent=5 // pred_region
        %s1301 = ssub.s32 %s18, 2
        // Predicated region
        $region61: #{tpu_custom_call.1} parent=59 // pred_check
          %p1302 = pneg %p173
        $region62: #{tpu_custom_call.1} parent=59 // pred_check_branch
          %1304 = sbr.rel (%p1302) target = $region64
        $region63: #{tpu_custom_call.1} parent=59 // pred_region
          %s1305 = sand.u32 %s158, 1
          %s1306 = scalar_lea.sflag [#allocation4], %s1305
          %s1307 = sand.u32 %s158, 1
          %s1308 = smul.addr %s1307, 128
          %s1309 = scalar_lea.vmem [#allocation8], %s1308
          %1310 = dma.done %s1306, 2048
        $region64: #{tpu_custom_call.1} parent=59 // pred_fallthru
          _
      $region60: #{tpu_custom_call.1} parent=5 // pred_fallthru
        _
    $region6: #{tpu_custom_call.1} parent=1 // loop_footer
      %s22 = sadd.s32 1, %s18
    $region7: #{tpu_custom_call.1} parent=1 // loop_footer_branch
      %17 = sbr.rel target = $region3
    $region8: #{tpu_custom_call.1} parent=1 // loop_exit
      _
    %1311 = vsyncpa [#allocation3], 1
    %s1312 = scalar_lea.sflag [#allocation3], 1
    %1313 = vsyncpa %s1312, 1
    %1314 = vsyncpa [#allocation6], 1
    %1315 = vsyncpa [#allocation4], 1
    %s1316 = scalar_lea.sflag [#allocation4], 1
    %1317 = vsyncpa %s1316, 1

</llo_original>
